<compile_context>
chip_gen: v5e
topology: v5e:2x2
jax: 0.10.0
libtpu: 0.0.40
codegen_flags: <defaults>
</compile_context>

<pallas_src>
import functools

import jax
import jax.numpy as jnp
from jax import lax
from jax.experimental import pallas as pl
from jax.experimental.pallas import tpu as pltpu


def _layernorm(x, gamma, beta, eps=1e-5):
    mu = jnp.mean(x, axis=-1, keepdims=True)
    var = jnp.mean(jnp.square(x - mu), axis=-1, keepdims=True)
    return (x - mu) * lax.rsqrt(var + eps) * gamma + beta


def _lstm_model_kernel(S, TB, H, nlayers,
                       x_ref, w_in_ref, b_in_ref, g_in_ref, be_in_ref,
                       wih_ref, whh_ref, b_lstm_ref,
                       wr1_ref, br1_ref, gr_ref, ber_ref, wr2_ref, br2_ref,
                       out_ref, seq_ref, xg_ref):
    f32 = jnp.float32
    bf16 = jnp.bfloat16
    half = H // 2

    # --- fused cate_proj + cont_emb: one block-diagonal matmul, LayerNorm per half ---
    # x_ref: (S*TB, Fin), tile-local time-major (row = t*TB + b_local), bf16.
    z = jnp.dot(x_ref[...], w_in_ref[...], preferred_element_type=f32) + b_in_ref[...]
    seq_ref[:, :half] = _layernorm(z[:, :half], g_in_ref[:, :half], be_in_ref[:, :half])
    seq_ref[:, half:] = _layernorm(z[:, half:], g_in_ref[:, half:], be_in_ref[:, half:])

    # --- stacked LSTM (batch_first); gate-column order here is (i, f, o, g) ----------
    h = None
    for layer in range(nlayers):        # nlayers is small and static -> Python loop
        # Hoisted input-to-hidden matmul for ALL timesteps (M = S*TB), bias folded in.
        xg_ref[...] = (jnp.dot(seq_ref[...].astype(bf16), wih_ref[layer],
                               preferred_element_type=f32) + b_lstm_ref[layer])
        whh_l = whh_ref[layer]                                 # (H, 4H), bf16

        def step(t, carry):
            h, c = carry
            r0 = pl.multiple_of(t * TB, TB)                    # 8-aligned row block
            gates = xg_ref[pl.ds(r0, TB), :] + jnp.dot(
                h.astype(bf16), whh_l, preferred_element_type=f32)
            sig = jax.nn.sigmoid(gates[:, :3 * H])             # i | f | o (one EUP pass)
            g_g = jnp.tanh(gates[:, 3 * H:])                   # g         (one EUP pass)
            c = sig[:, H:2 * H] * c + sig[:, :H] * g_g
            h = sig[:, 2 * H:3 * H] * jnp.tanh(c)
            seq_ref[pl.ds(r0, TB), :] = h                      # next layer's input
            return h, c

        h, _ = lax.fori_loop(
            0, S, step,
            (jnp.zeros((TB, H), f32), jnp.zeros((TB, H), f32)),
            unroll=(S <= 32))
        # inter-layer dropout is an inference no-op
    # TODO(synk): train-mode dropout (LSTM inter-layer + reg head) not implemented;
    # eval-mode (identity) semantics are used, matching model.eval().

    # --- regression head: Linear + LayerNorm + ReLU + Linear (last layer's final h) ---
    y = jnp.dot(h.astype(bf16), wr1_ref[...], preferred_element_type=f32) + br1_ref[...]
    y = _layernorm(y, gr_ref[...], ber_ref[...])
    y = jnp.maximum(y, 0.0)
    out_ref[...] = jnp.dot(y.astype(bf16), wr2_ref[...],
                           preferred_element_type=f32) + br2_ref[...]


def lstm_model_forward(params, cate_x, cont_x, mask, cfg):
    del mask  # the reference forward never uses it
    B, S, n_cate = cate_x.shape
    n_cont = cont_x.shape[-1]
    H = cfg["hidden_size"]
    emb = cfg["emb_size"]
    nlayers = cfg["nlayers"]
    target = cfg["target_size"]
    Fin = n_cate * emb + n_cont
    f32 = jnp.float32

    # --- glue: embedding gather (row 0 of the table is zero -> padding_idx=0) ---------
    cate_e = jnp.take(params["cate_emb"], cate_x, axis=0).reshape(B, S, n_cate * emb)
    x = jnp.concatenate([cate_e, cont_x.astype(f32)], axis=-1)          # (B, S, Fin)
    x = x.astype(jnp.bfloat16)                                          # halve input DMA

    # --- pad batch to a sublane multiple and pick the batch tile (grid axis) ----------
    B_pad = ((B + 7) // 8) * 8
    if B_pad != B:
        x = jnp.pad(x, ((0, B_pad - B), (0, 0), (0, 0)))
    TB = next(t for t in (32, 16, 8) if B_pad % t == 0)
    nbt = B_pad // TB

    # Tile-local time-major layout: within each batch tile, row = t*TB + b_local so the
    # recurrence reads/writes contiguous, 8-aligned row blocks per timestep.
    x = x.reshape(nbt, TB, S, Fin).transpose(0, 2, 1, 3).reshape(nbt, S * TB, Fin)

    kernel = functools.partial(_lstm_model_kernel, S, TB, H, nlayers)

    def _pinned(arr):                       # full-array block, resident across the grid
        zeros = (0,) * arr.ndim
        return pl.BlockSpec(arr.shape, lambda i, _z=zeros: _z)

    weights = (params["w_in"], params["b_in"], params["g_in"], params["be_in"],
               params["wih"], params["whh"], params["b_lstm"],
               params["wr1"], params["br1"], params["gr"], params["ber"],
               params["wr2"], params["br2"])

    out = pl.pallas_call(
        kernel,
        out_shape=jax.ShapeDtypeStruct((B_pad, target), f32),
        grid=(nbt,),
        in_specs=[pl.BlockSpec((None, S * TB, Fin), lambda i: (i, 0, 0))]
                 + [_pinned(w) for w in weights],
        out_specs=pl.BlockSpec((TB, target), lambda i: (i, 0)),
        scratch_shapes=[pltpu.VMEM((S * TB, H), f32),       # current layer sequence
                        pltpu.VMEM((S * TB, 4 * H), f32)],  # precomputed x-gates
        compiler_params=pltpu.CompilerParams(
            dimension_semantics=("parallel",),
            vmem_limit_bytes=32 * 1024 * 1024),
    )(x, *weights)
    return out[:B]


def init_params(key, cfg):
    H = cfg["hidden_size"]
    emb = cfg["emb_size"]
    n_cate = cfg["n_cate"]
    n_cont = cfg["n_cont"]
    nlayers = cfg["nlayers"]
    target = cfg["target_size"]
    total = cfg["total_cate_size"]
    half = H // 2
    Fin = emb * n_cate + n_cont
    f32, bf16 = jnp.float32, jnp.bfloat16

    ks = jax.random.split(key, 12)
    scale = 0.1

    emb_table = scale * jax.random.normal(ks[0], (total, emb), f32)
    emb_table = emb_table.at[0].set(0.0)                    # padding_idx=0

    # Fused input projection: block-diagonal (Fin, H) weight = diag(cate_proj, cont_emb).
    w_cate = scale * jax.random.normal(ks[1], (emb * n_cate, half), f32)
    w_cont = scale * jax.random.normal(ks[3], (n_cont, half), f32)
    w_in = jnp.zeros((Fin, H), f32)
    w_in = w_in.at[:emb * n_cate, :half].set(w_cate)
    w_in = w_in.at[emb * n_cate:, half:].set(w_cont)
    b_in = jnp.concatenate([scale * jax.random.normal(ks[2], (1, half), f32),
                            scale * jax.random.normal(ks[4], (1, half), f32)], axis=-1)

    # LSTM weights pre-transposed to (H_in, 4H); gate-column order is (i, f, o, g).
    # (Porting real PyTorch weights: transpose W_ih/W_hh and permute the (i,f,g,o)
    #  gate blocks to (i,f,o,g) consistently for weights and biases.)
    wih = scale * jax.random.normal(ks[5], (nlayers, H, 4 * H), f32)
    whh = scale * jax.random.normal(ks[6], (nlayers, H, 4 * H), f32)
    b_lstm = (scale * jax.random.normal(ks[7], (nlayers, 1, 4 * H), f32)
              + scale * jax.random.normal(ks[8], (nlayers, 1, 4 * H), f32))  # b_ih + b_hh

    wr1 = scale * jax.random.normal(ks[9], (H, H), f32)
    wr2 = scale * jax.random.normal(ks[10], (H, target), f32)

    return {
        "cate_emb": emb_table,
        "w_in": w_in.astype(bf16), "b_in": b_in,
        "g_in": jnp.ones((1, H), f32), "be_in": jnp.zeros((1, H), f32),
        "wih": wih.astype(bf16), "whh": whh.astype(bf16), "b_lstm": b_lstm,
        "wr1": wr1.astype(bf16), "br1": jnp.zeros((1, H), f32),
        "gr": jnp.ones((1, H), f32), "ber": jnp.zeros((1, H), f32),
        "wr2": wr2.astype(bf16), "br2": jnp.zeros((1, target), f32),
    }


if __name__ == "__main__":
    cfg = {
        "n_cate": 3,            # len(cfg.cate_cols)
        "n_cont": 4,            # len(cfg.cont_cols)
        "total_cate_size": 20,
        "emb_size": 8,
        "hidden_size": 32,
        "nlayers": 2,
        "seq_len": 8,
        "target_size": 2,
    }
    B, S = 2, cfg["seq_len"]

    key = jax.random.PRNGKey(0)
    k_param, k_cate, k_cont = jax.random.split(key, 3)

    params = init_params(k_param, cfg)
    cate_x = jax.random.randint(k_cate, (B, S, cfg["n_cate"]), 0,
                                cfg["total_cate_size"], dtype=jnp.int32)
    cont_x = jax.random.normal(k_cont, (B, S, cfg["n_cont"]), jnp.float32)
    mask = jnp.ones((B, S), jnp.float32)

    out = lstm_model_forward(params, cate_x, cont_x, mask, cfg)
    out = jax.block_until_ready(out)
    assert out.shape == (B, cfg["target_size"])
    print("KERNEL_OK")
</pallas_src>

<mosaic_0001>
module attributes {stable_mosaic.version = 11 : i64} {
  func.func @_lstm_model_kernel(%arg0: i32, %arg1: memref<1x64x28xbf16, #tpu.memory_space<vmem>>, %arg2: memref<28x32xbf16, #tpu.memory_space<vmem>>, %arg3: memref<1x32xf32, #tpu.memory_space<vmem>>, %arg4: memref<1x32xf32, #tpu.memory_space<vmem>>, %arg5: memref<1x32xf32, #tpu.memory_space<vmem>>, %arg6: memref<2x32x128xbf16, #tpu.memory_space<vmem>>, %arg7: memref<2x32x128xbf16, #tpu.memory_space<vmem>>, %arg8: memref<2x1x128xf32, #tpu.memory_space<vmem>>, %arg9: memref<32x32xbf16, #tpu.memory_space<vmem>>, %arg10: memref<1x32xf32, #tpu.memory_space<vmem>>, %arg11: memref<1x32xf32, #tpu.memory_space<vmem>>, %arg12: memref<1x32xf32, #tpu.memory_space<vmem>>, %arg13: memref<32x2xbf16, #tpu.memory_space<vmem>>, %arg14: memref<1x2xf32, #tpu.memory_space<vmem>>, %arg15: memref<8x2xf32, #tpu.memory_space<vmem>>, %arg16: memref<64x32xf32, #tpu.memory_space<vmem>>, %arg17: memref<64x128xf32, #tpu.memory_space<vmem>>) attributes {dimension_semantics = [#tpu.dimension_semantics<parallel>], iteration_bounds = array<i64: 1>, scalar_prefetch = 0 : i64, scratch_operands = 2 : i64, tpu.core_type = #tpu.core_type<tc>, window_params = [{transform_indices = @transform_0, window_bounds = array<i64: 1, 64, 28>}, {pipeline_mode = #tpu.pipeline_mode<synchronous>, transform_indices = @transform_1, window_bounds = array<i64: 28, 32>}, {pipeline_mode = #tpu.pipeline_mode<synchronous>, transform_indices = @transform_2, window_bounds = array<i64: 1, 32>}, {pipeline_mode = #tpu.pipeline_mode<synchronous>, transform_indices = @transform_3, window_bounds = array<i64: 1, 32>}, {pipeline_mode = #tpu.pipeline_mode<synchronous>, transform_indices = @transform_4, window_bounds = array<i64: 1, 32>}, {pipeline_mode = #tpu.pipeline_mode<synchronous>, transform_indices = @transform_5, window_bounds = array<i64: 2, 32, 128>}, {pipeline_mode = #tpu.pipeline_mode<synchronous>, transform_indices = @transform_6, window_bounds = array<i64: 2, 32, 128>}, {pipeline_mode = #tpu.pipeline_mode<synchronous>, transform_indices = @transform_7, window_bounds = array<i64: 2, 1, 128>}, {pipeline_mode = #tpu.pipeline_mode<synchronous>, transform_indices = @transform_8, window_bounds = array<i64: 32, 32>}, {pipeline_mode = #tpu.pipeline_mode<synchronous>, transform_indices = @transform_9, window_bounds = array<i64: 1, 32>}, {pipeline_mode = #tpu.pipeline_mode<synchronous>, transform_indices = @transform_10, window_bounds = array<i64: 1, 32>}, {pipeline_mode = #tpu.pipeline_mode<synchronous>, transform_indices = @transform_11, window_bounds = array<i64: 1, 32>}, {pipeline_mode = #tpu.pipeline_mode<synchronous>, transform_indices = @transform_12, window_bounds = array<i64: 32, 2>}, {pipeline_mode = #tpu.pipeline_mode<synchronous>, transform_indices = @transform_13, window_bounds = array<i64: 1, 2>}, {transform_indices = @transform_14, window_bounds = array<i64: 8, 2>}]} {
    %c0 = arith.constant 0 : index
    %c0_0 = arith.constant 0 : index
    %c0_1 = arith.constant 0 : index
    %0 = vector.load %arg1[%c0, %c0_0, %c0_1] : memref<1x64x28xbf16, #tpu.memory_space<vmem>>, vector<1x64x28xbf16>
    %1 = vector.shape_cast %0 : vector<1x64x28xbf16> to vector<64x28xbf16>
    %c0_2 = arith.constant 0 : index
    %c0_3 = arith.constant 0 : index
    %2 = vector.load %arg2[%c0_2, %c0_3] : memref<28x32xbf16, #tpu.memory_space<vmem>>, vector<28x32xbf16>
    %cst = arith.constant dense<0.000000e+00> : vector<64x32xf32>
    %3 = tpu.matmul %1, %2, %cst {dimension_numbers = #tpu.dot_dimension_numbers<[1], [0], [0], [1], [0, 0, 1, 1], [], []>} : vector<64x28xbf16>, vector<28x32xbf16>, vector<64x32xf32> -> vector<64x32xf32>
    %c0_4 = arith.constant 0 : index
    %c0_5 = arith.constant 0 : index
    %4 = vector.load %arg3[%c0_4, %c0_5] : memref<1x32xf32, #tpu.memory_space<vmem>>, vector<1x32xf32>
    %5 = vector.broadcast %4 : vector<1x32xf32> to vector<64x32xf32>
    %6 = arith.addf %3, %5 : vector<64x32xf32>
    %7 = vector.extract_strided_slice %6 {offsets = [0, 0], sizes = [64, 16], strides = [1, 1]} : vector<64x32xf32> to vector<64x16xf32>
    %c0_6 = arith.constant 0 : index
    %c0_7 = arith.constant 0 : index
    %8 = vector.load %arg4[%c0_6, %c0_7] : memref<1x32xf32, #tpu.memory_space<vmem>>, vector<1x16xf32>
    %c0_8 = arith.constant 0 : index
    %c0_9 = arith.constant 0 : index
    %9 = vector.load %arg5[%c0_8, %c0_9] : memref<1x32xf32, #tpu.memory_space<vmem>>, vector<1x16xf32>
    %cst_10 = arith.constant dense<0.000000e+00> : vector<64xf32>
    %10 = vector.multi_reduction <add>, %7, %cst_10 [1] : vector<64x16xf32> to vector<64xf32>
    %11 = vector.shape_cast %10 : vector<64xf32> to vector<64x1xf32>
    %cst_11 = arith.constant 1.600000e+01 : f32
    %12 = vector.broadcast %cst_11 : f32 to vector<64x1xf32>
    %13 = arith.divf %11, %12 : vector<64x1xf32>
    %14 = vector.broadcast %13 : vector<64x1xf32> to vector<64x16xf32>
    %15 = arith.subf %7, %14 : vector<64x16xf32>
    %16 = arith.mulf %15, %15 : vector<64x16xf32>
    %cst_12 = arith.constant dense<0.000000e+00> : vector<64xf32>
    %17 = vector.multi_reduction <add>, %16, %cst_12 [1] : vector<64x16xf32> to vector<64xf32>
    %18 = vector.shape_cast %17 : vector<64xf32> to vector<64x1xf32>
    %cst_13 = arith.constant 1.600000e+01 : f32
    %19 = vector.broadcast %cst_13 : f32 to vector<64x1xf32>
    %20 = arith.divf %18, %19 : vector<64x1xf32>
    %21 = vector.broadcast %13 : vector<64x1xf32> to vector<64x16xf32>
    %22 = arith.subf %7, %21 : vector<64x16xf32>
    %cst_14 = arith.constant 9.99999974E-6 : f32
    %23 = vector.broadcast %cst_14 : f32 to vector<64x1xf32>
    %24 = arith.addf %20, %23 : vector<64x1xf32>
    %25 = math.rsqrt %24 : vector<64x1xf32>
    %26 = vector.broadcast %25 : vector<64x1xf32> to vector<64x16xf32>
    %27 = arith.mulf %22, %26 : vector<64x16xf32>
    %28 = vector.broadcast %8 : vector<1x16xf32> to vector<64x16xf32>
    %29 = arith.mulf %27, %28 : vector<64x16xf32>
    %30 = vector.broadcast %9 : vector<1x16xf32> to vector<64x16xf32>
    %31 = arith.addf %29, %30 : vector<64x16xf32>
    %c0_15 = arith.constant 0 : index
    %c0_16 = arith.constant 0 : index
    %32 = vector.load %arg16[%c0_15, %c0_16] : memref<64x32xf32, #tpu.memory_space<vmem>>, vector<64x16xf32>
    tpu.vector_store %arg16[%c0_15, %c0_16], %31 {strides = array<i32>} : memref<64x32xf32, #tpu.memory_space<vmem>>, vector<64x16xf32>,
    %33 = vector.extract_strided_slice %6 {offsets = [0, 16], sizes = [64, 16], strides = [1, 1]} : vector<64x32xf32> to vector<64x16xf32>
    %c0_17 = arith.constant 0 : index
    %c16 = arith.constant 16 : index
    %34 = vector.load %arg4[%c0_17, %c16] : memref<1x32xf32, #tpu.memory_space<vmem>>, vector<1x16xf32>
    %c0_18 = arith.constant 0 : index
    %c16_19 = arith.constant 16 : index
    %35 = vector.load %arg5[%c0_18, %c16_19] : memref<1x32xf32, #tpu.memory_space<vmem>>, vector<1x16xf32>
    %cst_20 = arith.constant dense<0.000000e+00> : vector<64xf32>
    %36 = vector.multi_reduction <add>, %33, %cst_20 [1] : vector<64x16xf32> to vector<64xf32>
    %37 = vector.shape_cast %36 : vector<64xf32> to vector<64x1xf32>
    %cst_21 = arith.constant 1.600000e+01 : f32
    %38 = vector.broadcast %cst_21 : f32 to vector<64x1xf32>
    %39 = arith.divf %37, %38 : vector<64x1xf32>
    %40 = vector.broadcast %39 : vector<64x1xf32> to vector<64x16xf32>
    %41 = arith.subf %33, %40 : vector<64x16xf32>
    %42 = arith.mulf %41, %41 : vector<64x16xf32>
    %cst_22 = arith.constant dense<0.000000e+00> : vector<64xf32>
    %43 = vector.multi_reduction <add>, %42, %cst_22 [1] : vector<64x16xf32> to vector<64xf32>
    %44 = vector.shape_cast %43 : vector<64xf32> to vector<64x1xf32>
    %cst_23 = arith.constant 1.600000e+01 : f32
    %45 = vector.broadcast %cst_23 : f32 to vector<64x1xf32>
    %46 = arith.divf %44, %45 : vector<64x1xf32>
    %47 = vector.broadcast %39 : vector<64x1xf32> to vector<64x16xf32>
    %48 = arith.subf %33, %47 : vector<64x16xf32>
    %cst_24 = arith.constant 9.99999974E-6 : f32
    %49 = vector.broadcast %cst_24 : f32 to vector<64x1xf32>
    %50 = arith.addf %46, %49 : vector<64x1xf32>
    %51 = math.rsqrt %50 : vector<64x1xf32>
    %52 = vector.broadcast %51 : vector<64x1xf32> to vector<64x16xf32>
    %53 = arith.mulf %48, %52 : vector<64x16xf32>
    %54 = vector.broadcast %34 : vector<1x16xf32> to vector<64x16xf32>
    %55 = arith.mulf %53, %54 : vector<64x16xf32>
    %56 = vector.broadcast %35 : vector<1x16xf32> to vector<64x16xf32>
    %57 = arith.addf %55, %56 : vector<64x16xf32>
    %c0_25 = arith.constant 0 : index
    %c16_26 = arith.constant 16 : index
    %58 = vector.load %arg16[%c0_25, %c16_26] : memref<64x32xf32, #tpu.memory_space<vmem>>, vector<64x16xf32>
    tpu.vector_store %arg16[%c0_25, %c16_26], %57 {strides = array<i32>} : memref<64x32xf32, #tpu.memory_space<vmem>>, vector<64x16xf32>,
    %c0_27 = arith.constant 0 : index
    %c0_28 = arith.constant 0 : index
    %59 = vector.load %arg16[%c0_27, %c0_28] : memref<64x32xf32, #tpu.memory_space<vmem>>, vector<64x32xf32>
    %60 = arith.truncf %59 : vector<64x32xf32> to vector<64x32xbf16>
    %c0_29 = arith.constant 0 : index
    %c0_30 = arith.constant 0 : index
    %c0_31 = arith.constant 0 : index
    %61 = vector.load %arg6[%c0_29, %c0_30, %c0_31] : memref<2x32x128xbf16, #tpu.memory_space<vmem>>, vector<1x32x128xbf16>
    %62 = vector.shape_cast %61 : vector<1x32x128xbf16> to vector<32x128xbf16>
    %cst_32 = arith.constant dense<0.000000e+00> : vector<64x128xf32>
    %63 = tpu.matmul %60, %62, %cst_32 {dimension_numbers = #tpu.dot_dimension_numbers<[1], [0], [0], [1], [0, 0, 1, 1], [], []>} : vector<64x32xbf16>, vector<32x128xbf16>, vector<64x128xf32> -> vector<64x128xf32>
    %c0_33 = arith.constant 0 : index
    %c0_34 = arith.constant 0 : index
    %c0_35 = arith.constant 0 : index
    %64 = vector.load %arg8[%c0_33, %c0_34, %c0_35] : memref<2x1x128xf32, #tpu.memory_space<vmem>>, vector<1x1x128xf32>
    %65 = vector.shape_cast %64 : vector<1x1x128xf32> to vector<1x128xf32>
    %66 = vector.broadcast %65 : vector<1x128xf32> to vector<64x128xf32>
    %67 = arith.addf %63, %66 : vector<64x128xf32>
    %c0_36 = arith.constant 0 : index
    %c0_37 = arith.constant 0 : index
    %68 = vector.load %arg17[%c0_36, %c0_37] : memref<64x128xf32, #tpu.memory_space<vmem>>, vector<64x128xf32>
    tpu.vector_store %arg17[%c0_36, %c0_37], %67 {strides = array<i32>} : memref<64x128xf32, #tpu.memory_space<vmem>>, vector<64x128xf32>,
    %c0_38 = arith.constant 0 : index
    %c0_39 = arith.constant 0 : index
    %c0_40 = arith.constant 0 : index
    %69 = vector.load %arg7[%c0_38, %c0_39, %c0_40] : memref<2x32x128xbf16, #tpu.memory_space<vmem>>, vector<1x32x128xbf16>
    %70 = vector.shape_cast %69 : vector<1x32x128xbf16> to vector<32x128xbf16>
    %cst_41 = arith.constant 0.000000e+00 : f32
    %71 = vector.broadcast %cst_41 : f32 to vector<8x32xf32>
    %cst_42 = arith.constant 0.000000e+00 : f32
    %72 = vector.broadcast %cst_42 : f32 to vector<8x32xf32>
    %c0_i32 = arith.constant 0 : i32
    %c8_i32 = arith.constant 8 : i32
    %73 = arith.muli %c0_i32, %c8_i32 : i32
    %74 = tpu.assume_multiple %73, 8 : i32
    %75 = arith.index_cast %74 : i32 to index
    %c0_43 = arith.constant 0 : index
    %76 = vector.load %arg17[%75, %c0_43] : memref<64x128xf32, #tpu.memory_space<vmem>>, vector<8x128xf32>
    %77 = arith.truncf %71 : vector<8x32xf32> to vector<8x32xbf16>
    %cst_44 = arith.constant dense<0.000000e+00> : vector<8x128xf32>
    %78 = tpu.matmul %77, %70, %cst_44 {dimension_numbers = #tpu.dot_dimension_numbers<[1], [0], [0], [1], [0, 0, 1, 1], [], []>} : vector<8x32xbf16>, vector<32x128xbf16>, vector<8x128xf32> -> vector<8x128xf32>
    %79 = arith.addf %76, %78 : vector<8x128xf32>
    %80 = vector.extract_strided_slice %79 {offsets = [0, 0], sizes = [8, 96], strides = [1, 1]} : vector<8x128xf32> to vector<8x96xf32>
    %81 = arith.negf %80 : vector<8x96xf32>
    %82 = math.exp %81 : vector<8x96xf32>
    %cst_45 = arith.constant 1.000000e+00 : f32
    %83 = vector.broadcast %cst_45 : f32 to vector<8x96xf32>
    %84 = arith.addf %83, %82 : vector<8x96xf32>
    %85 = arith.divf %83, %84 : vector<8x96xf32>
    %86 = vector.extract_strided_slice %79 {offsets = [0, 96], sizes = [8, 32], strides = [1, 1]} : vector<8x128xf32> to vector<8x32xf32>
    %87 = math.tanh %86 : vector<8x32xf32>
    %88 = vector.extract_strided_slice %85 {offsets = [0, 32], sizes = [8, 32], strides = [1, 1]} : vector<8x96xf32> to vector<8x32xf32>
    %89 = arith.mulf %88, %72 : vector<8x32xf32>
    %90 = vector.extract_strided_slice %85 {offsets = [0, 0], sizes = [8, 32], strides = [1, 1]} : vector<8x96xf32> to vector<8x32xf32>
    %91 = arith.mulf %90, %87 : vector<8x32xf32>
    %92 = arith.addf %89, %91 : vector<8x32xf32>
    %93 = vector.extract_strided_slice %85 {offsets = [0, 64], sizes = [8, 32], strides = [1, 1]} : vector<8x96xf32> to vector<8x32xf32>
    %94 = math.tanh %92 : vector<8x32xf32>
    %95 = arith.mulf %93, %94 : vector<8x32xf32>
    %96 = arith.index_cast %74 : i32 to index
    %c0_46 = arith.constant 0 : index
    %97 = vector.load %arg16[%96, %c0_46] : memref<64x32xf32, #tpu.memory_space<vmem>>, vector<8x32xf32>
    tpu.vector_store %arg16[%96, %c0_46], %95 {strides = array<i32>} : memref<64x32xf32, #tpu.memory_space<vmem>>, vector<8x32xf32>,
    %c1_i32 = arith.constant 1 : i32
    %c8_i32_47 = arith.constant 8 : i32
    %98 = arith.muli %c1_i32, %c8_i32_47 : i32
    %99 = tpu.assume_multiple %98, 8 : i32
    %100 = arith.index_cast %99 : i32 to index
    %c0_48 = arith.constant 0 : index
    %101 = vector.load %arg17[%100, %c0_48] : memref<64x128xf32, #tpu.memory_space<vmem>>, vector<8x128xf32>
    %102 = arith.truncf %95 : vector<8x32xf32> to vector<8x32xbf16>
    %cst_49 = arith.constant dense<0.000000e+00> : vector<8x128xf32>
    %103 = tpu.matmul %102, %70, %cst_49 {dimension_numbers = #tpu.dot_dimension_numbers<[1], [0], [0], [1], [0, 0, 1, 1], [], []>} : vector<8x32xbf16>, vector<32x128xbf16>, vector<8x128xf32> -> vector<8x128xf32>
    %104 = arith.addf %101, %103 : vector<8x128xf32>
    %105 = vector.extract_strided_slice %104 {offsets = [0, 0], sizes = [8, 96], strides = [1, 1]} : vector<8x128xf32> to vector<8x96xf32>
    %106 = arith.negf %105 : vector<8x96xf32>
    %107 = math.exp %106 : vector<8x96xf32>
    %cst_50 = arith.constant 1.000000e+00 : f32
    %108 = vector.broadcast %cst_50 : f32 to vector<8x96xf32>
    %109 = arith.addf %108, %107 : vector<8x96xf32>
    %110 = arith.divf %108, %109 : vector<8x96xf32>
    %111 = vector.extract_strided_slice %104 {offsets = [0, 96], sizes = [8, 32], strides = [1, 1]} : vector<8x128xf32> to vector<8x32xf32>
    %112 = math.tanh %111 : vector<8x32xf32>
    %113 = vector.extract_strided_slice %110 {offsets = [0, 32], sizes = [8, 32], strides = [1, 1]} : vector<8x96xf32> to vector<8x32xf32>
    %114 = arith.mulf %113, %92 : vector<8x32xf32>
    %115 = vector.extract_strided_slice %110 {offsets = [0, 0], sizes = [8, 32], strides = [1, 1]} : vector<8x96xf32> to vector<8x32xf32>
    %116 = arith.mulf %115, %112 : vector<8x32xf32>
    %117 = arith.addf %114, %116 : vector<8x32xf32>
    %118 = vector.extract_strided_slice %110 {offsets = [0, 64], sizes = [8, 32], strides = [1, 1]} : vector<8x96xf32> to vector<8x32xf32>
    %119 = math.tanh %117 : vector<8x32xf32>
    %120 = arith.mulf %118, %119 : vector<8x32xf32>
    %121 = arith.index_cast %99 : i32 to index
    %c0_51 = arith.constant 0 : index
    %122 = vector.load %arg16[%121, %c0_51] : memref<64x32xf32, #tpu.memory_space<vmem>>, vector<8x32xf32>
    tpu.vector_store %arg16[%121, %c0_51], %120 {strides = array<i32>} : memref<64x32xf32, #tpu.memory_space<vmem>>, vector<8x32xf32>,
    %c2_i32 = arith.constant 2 : i32
    %c8_i32_52 = arith.constant 8 : i32
    %123 = arith.muli %c2_i32, %c8_i32_52 : i32
    %124 = tpu.assume_multiple %123, 8 : i32
    %125 = arith.index_cast %124 : i32 to index
    %c0_53 = arith.constant 0 : index
    %126 = vector.load %arg17[%125, %c0_53] : memref<64x128xf32, #tpu.memory_space<vmem>>, vector<8x128xf32>
    %127 = arith.truncf %120 : vector<8x32xf32> to vector<8x32xbf16>
    %cst_54 = arith.constant dense<0.000000e+00> : vector<8x128xf32>
    %128 = tpu.matmul %127, %70, %cst_54 {dimension_numbers = #tpu.dot_dimension_numbers<[1], [0], [0], [1], [0, 0, 1, 1], [], []>} : vector<8x32xbf16>, vector<32x128xbf16>, vector<8x128xf32> -> vector<8x128xf32>
    %129 = arith.addf %126, %128 : vector<8x128xf32>
    %130 = vector.extract_strided_slice %129 {offsets = [0, 0], sizes = [8, 96], strides = [1, 1]} : vector<8x128xf32> to vector<8x96xf32>
    %131 = arith.negf %130 : vector<8x96xf32>
    %132 = math.exp %131 : vector<8x96xf32>
    %cst_55 = arith.constant 1.000000e+00 : f32
    %133 = vector.broadcast %cst_55 : f32 to vector<8x96xf32>
    %134 = arith.addf %133, %132 : vector<8x96xf32>
    %135 = arith.divf %133, %134 : vector<8x96xf32>
    %136 = vector.extract_strided_slice %129 {offsets = [0, 96], sizes = [8, 32], strides = [1, 1]} : vector<8x128xf32> to vector<8x32xf32>
    %137 = math.tanh %136 : vector<8x32xf32>
    %138 = vector.extract_strided_slice %135 {offsets = [0, 32], sizes = [8, 32], strides = [1, 1]} : vector<8x96xf32> to vector<8x32xf32>
    %139 = arith.mulf %138, %117 : vector<8x32xf32>
    %140 = vector.extract_strided_slice %135 {offsets = [0, 0], sizes = [8, 32], strides = [1, 1]} : vector<8x96xf32> to vector<8x32xf32>
    %141 = arith.mulf %140, %137 : vector<8x32xf32>
    %142 = arith.addf %139, %141 : vector<8x32xf32>
    %143 = vector.extract_strided_slice %135 {offsets = [0, 64], sizes = [8, 32], strides = [1, 1]} : vector<8x96xf32> to vector<8x32xf32>
    %144 = math.tanh %142 : vector<8x32xf32>
    %145 = arith.mulf %143, %144 : vector<8x32xf32>
    %146 = arith.index_cast %124 : i32 to index
    %c0_56 = arith.constant 0 : index
    %147 = vector.load %arg16[%146, %c0_56] : memref<64x32xf32, #tpu.memory_space<vmem>>, vector<8x32xf32>
    tpu.vector_store %arg16[%146, %c0_56], %145 {strides = array<i32>} : memref<64x32xf32, #tpu.memory_space<vmem>>, vector<8x32xf32>,
    %c3_i32 = arith.constant 3 : i32
    %c8_i32_57 = arith.constant 8 : i32
    %148 = arith.muli %c3_i32, %c8_i32_57 : i32
    %149 = tpu.assume_multiple %148, 8 : i32
    %150 = arith.index_cast %149 : i32 to index
    %c0_58 = arith.constant 0 : index
    %151 = vector.load %arg17[%150, %c0_58] : memref<64x128xf32, #tpu.memory_space<vmem>>, vector<8x128xf32>
    %152 = arith.truncf %145 : vector<8x32xf32> to vector<8x32xbf16>
    %cst_59 = arith.constant dense<0.000000e+00> : vector<8x128xf32>
    %153 = tpu.matmul %152, %70, %cst_59 {dimension_numbers = #tpu.dot_dimension_numbers<[1], [0], [0], [1], [0, 0, 1, 1], [], []>} : vector<8x32xbf16>, vector<32x128xbf16>, vector<8x128xf32> -> vector<8x128xf32>
    %154 = arith.addf %151, %153 : vector<8x128xf32>
    %155 = vector.extract_strided_slice %154 {offsets = [0, 0], sizes = [8, 96], strides = [1, 1]} : vector<8x128xf32> to vector<8x96xf32>
    %156 = arith.negf %155 : vector<8x96xf32>
    %157 = math.exp %156 : vector<8x96xf32>
    %cst_60 = arith.constant 1.000000e+00 : f32
    %158 = vector.broadcast %cst_60 : f32 to vector<8x96xf32>
    %159 = arith.addf %158, %157 : vector<8x96xf32>
    %160 = arith.divf %158, %159 : vector<8x96xf32>
    %161 = vector.extract_strided_slice %154 {offsets = [0, 96], sizes = [8, 32], strides = [1, 1]} : vector<8x128xf32> to vector<8x32xf32>
    %162 = math.tanh %161 : vector<8x32xf32>
    %163 = vector.extract_strided_slice %160 {offsets = [0, 32], sizes = [8, 32], strides = [1, 1]} : vector<8x96xf32> to vector<8x32xf32>
    %164 = arith.mulf %163, %142 : vector<8x32xf32>
    %165 = vector.extract_strided_slice %160 {offsets = [0, 0], sizes = [8, 32], strides = [1, 1]} : vector<8x96xf32> to vector<8x32xf32>
    %166 = arith.mulf %165, %162 : vector<8x32xf32>
    %167 = arith.addf %164, %166 : vector<8x32xf32>
    %168 = vector.extract_strided_slice %160 {offsets = [0, 64], sizes = [8, 32], strides = [1, 1]} : vector<8x96xf32> to vector<8x32xf32>
    %169 = math.tanh %167 : vector<8x32xf32>
    %170 = arith.mulf %168, %169 : vector<8x32xf32>
    %171 = arith.index_cast %149 : i32 to index
    %c0_61 = arith.constant 0 : index
    %172 = vector.load %arg16[%171, %c0_61] : memref<64x32xf32, #tpu.memory_space<vmem>>, vector<8x32xf32>
    tpu.vector_store %arg16[%171, %c0_61], %170 {strides = array<i32>} : memref<64x32xf32, #tpu.memory_space<vmem>>, vector<8x32xf32>,
    %c4_i32 = arith.constant 4 : i32
    %c8_i32_62 = arith.constant 8 : i32
    %173 = arith.muli %c4_i32, %c8_i32_62 : i32
    %174 = tpu.assume_multiple %173, 8 : i32
    %175 = arith.index_cast %174 : i32 to index
    %c0_63 = arith.constant 0 : index
    %176 = vector.load %arg17[%175, %c0_63] : memref<64x128xf32, #tpu.memory_space<vmem>>, vector<8x128xf32>
    %177 = arith.truncf %170 : vector<8x32xf32> to vector<8x32xbf16>
    %cst_64 = arith.constant dense<0.000000e+00> : vector<8x128xf32>
    %178 = tpu.matmul %177, %70, %cst_64 {dimension_numbers = #tpu.dot_dimension_numbers<[1], [0], [0], [1], [0, 0, 1, 1], [], []>} : vector<8x32xbf16>, vector<32x128xbf16>, vector<8x128xf32> -> vector<8x128xf32>
    %179 = arith.addf %176, %178 : vector<8x128xf32>
    %180 = vector.extract_strided_slice %179 {offsets = [0, 0], sizes = [8, 96], strides = [1, 1]} : vector<8x128xf32> to vector<8x96xf32>
    %181 = arith.negf %180 : vector<8x96xf32>
    %182 = math.exp %181 : vector<8x96xf32>
    %cst_65 = arith.constant 1.000000e+00 : f32
    %183 = vector.broadcast %cst_65 : f32 to vector<8x96xf32>
    %184 = arith.addf %183, %182 : vector<8x96xf32>
    %185 = arith.divf %183, %184 : vector<8x96xf32>
    %186 = vector.extract_strided_slice %179 {offsets = [0, 96], sizes = [8, 32], strides = [1, 1]} : vector<8x128xf32> to vector<8x32xf32>
    %187 = math.tanh %186 : vector<8x32xf32>
    %188 = vector.extract_strided_slice %185 {offsets = [0, 32], sizes = [8, 32], strides = [1, 1]} : vector<8x96xf32> to vector<8x32xf32>
    %189 = arith.mulf %188, %167 : vector<8x32xf32>
    %190 = vector.extract_strided_slice %185 {offsets = [0, 0], sizes = [8, 32], strides = [1, 1]} : vector<8x96xf32> to vector<8x32xf32>
    %191 = arith.mulf %190, %187 : vector<8x32xf32>
    %192 = arith.addf %189, %191 : vector<8x32xf32>
    %193 = vector.extract_strided_slice %185 {offsets = [0, 64], sizes = [8, 32], strides = [1, 1]} : vector<8x96xf32> to vector<8x32xf32>
    %194 = math.tanh %192 : vector<8x32xf32>
    %195 = arith.mulf %193, %194 : vector<8x32xf32>
    %196 = arith.index_cast %174 : i32 to index
    %c0_66 = arith.constant 0 : index
    %197 = vector.load %arg16[%196, %c0_66] : memref<64x32xf32, #tpu.memory_space<vmem>>, vector<8x32xf32>
    tpu.vector_store %arg16[%196, %c0_66], %195 {strides = array<i32>} : memref<64x32xf32, #tpu.memory_space<vmem>>, vector<8x32xf32>,
    %c5_i32 = arith.constant 5 : i32
    %c8_i32_67 = arith.constant 8 : i32
    %198 = arith.muli %c5_i32, %c8_i32_67 : i32
    %199 = tpu.assume_multiple %198, 8 : i32
    %200 = arith.index_cast %199 : i32 to index
    %c0_68 = arith.constant 0 : index
    %201 = vector.load %arg17[%200, %c0_68] : memref<64x128xf32, #tpu.memory_space<vmem>>, vector<8x128xf32>
    %202 = arith.truncf %195 : vector<8x32xf32> to vector<8x32xbf16>
    %cst_69 = arith.constant dense<0.000000e+00> : vector<8x128xf32>
    %203 = tpu.matmul %202, %70, %cst_69 {dimension_numbers = #tpu.dot_dimension_numbers<[1], [0], [0], [1], [0, 0, 1, 1], [], []>} : vector<8x32xbf16>, vector<32x128xbf16>, vector<8x128xf32> -> vector<8x128xf32>
    %204 = arith.addf %201, %203 : vector<8x128xf32>
    %205 = vector.extract_strided_slice %204 {offsets = [0, 0], sizes = [8, 96], strides = [1, 1]} : vector<8x128xf32> to vector<8x96xf32>
    %206 = arith.negf %205 : vector<8x96xf32>
    %207 = math.exp %206 : vector<8x96xf32>
    %cst_70 = arith.constant 1.000000e+00 : f32
    %208 = vector.broadcast %cst_70 : f32 to vector<8x96xf32>
    %209 = arith.addf %208, %207 : vector<8x96xf32>
    %210 = arith.divf %208, %209 : vector<8x96xf32>
    %211 = vector.extract_strided_slice %204 {offsets = [0, 96], sizes = [8, 32], strides = [1, 1]} : vector<8x128xf32> to vector<8x32xf32>
    %212 = math.tanh %211 : vector<8x32xf32>
    %213 = vector.extract_strided_slice %210 {offsets = [0, 32], sizes = [8, 32], strides = [1, 1]} : vector<8x96xf32> to vector<8x32xf32>
    %214 = arith.mulf %213, %192 : vector<8x32xf32>
    %215 = vector.extract_strided_slice %210 {offsets = [0, 0], sizes = [8, 32], strides = [1, 1]} : vector<8x96xf32> to vector<8x32xf32>
    %216 = arith.mulf %215, %212 : vector<8x32xf32>
    %217 = arith.addf %214, %216 : vector<8x32xf32>
    %218 = vector.extract_strided_slice %210 {offsets = [0, 64], sizes = [8, 32], strides = [1, 1]} : vector<8x96xf32> to vector<8x32xf32>
    %219 = math.tanh %217 : vector<8x32xf32>
    %220 = arith.mulf %218, %219 : vector<8x32xf32>
    %221 = arith.index_cast %199 : i32 to index
    %c0_71 = arith.constant 0 : index
    %222 = vector.load %arg16[%221, %c0_71] : memref<64x32xf32, #tpu.memory_space<vmem>>, vector<8x32xf32>
    tpu.vector_store %arg16[%221, %c0_71], %220 {strides = array<i32>} : memref<64x32xf32, #tpu.memory_space<vmem>>, vector<8x32xf32>,
    %c6_i32 = arith.constant 6 : i32
    %c8_i32_72 = arith.constant 8 : i32
    %223 = arith.muli %c6_i32, %c8_i32_72 : i32
    %224 = tpu.assume_multiple %223, 8 : i32
    %225 = arith.index_cast %224 : i32 to index
    %c0_73 = arith.constant 0 : index
    %226 = vector.load %arg17[%225, %c0_73] : memref<64x128xf32, #tpu.memory_space<vmem>>, vector<8x128xf32>
    %227 = arith.truncf %220 : vector<8x32xf32> to vector<8x32xbf16>
    %cst_74 = arith.constant dense<0.000000e+00> : vector<8x128xf32>
    %228 = tpu.matmul %227, %70, %cst_74 {dimension_numbers = #tpu.dot_dimension_numbers<[1], [0], [0], [1], [0, 0, 1, 1], [], []>} : vector<8x32xbf16>, vector<32x128xbf16>, vector<8x128xf32> -> vector<8x128xf32>
    %229 = arith.addf %226, %228 : vector<8x128xf32>
    %230 = vector.extract_strided_slice %229 {offsets = [0, 0], sizes = [8, 96], strides = [1, 1]} : vector<8x128xf32> to vector<8x96xf32>
    %231 = arith.negf %230 : vector<8x96xf32>
    %232 = math.exp %231 : vector<8x96xf32>
    %cst_75 = arith.constant 1.000000e+00 : f32
    %233 = vector.broadcast %cst_75 : f32 to vector<8x96xf32>
    %234 = arith.addf %233, %232 : vector<8x96xf32>
    %235 = arith.divf %233, %234 : vector<8x96xf32>
    %236 = vector.extract_strided_slice %229 {offsets = [0, 96], sizes = [8, 32], strides = [1, 1]} : vector<8x128xf32> to vector<8x32xf32>
    %237 = math.tanh %236 : vector<8x32xf32>
    %238 = vector.extract_strided_slice %235 {offsets = [0, 32], sizes = [8, 32], strides = [1, 1]} : vector<8x96xf32> to vector<8x32xf32>
    %239 = arith.mulf %238, %217 : vector<8x32xf32>
    %240 = vector.extract_strided_slice %235 {offsets = [0, 0], sizes = [8, 32], strides = [1, 1]} : vector<8x96xf32> to vector<8x32xf32>
    %241 = arith.mulf %240, %237 : vector<8x32xf32>
    %242 = arith.addf %239, %241 : vector<8x32xf32>
    %243 = vector.extract_strided_slice %235 {offsets = [0, 64], sizes = [8, 32], strides = [1, 1]} : vector<8x96xf32> to vector<8x32xf32>
    %244 = math.tanh %242 : vector<8x32xf32>
    %245 = arith.mulf %243, %244 : vector<8x32xf32>
    %246 = arith.index_cast %224 : i32 to index
    %c0_76 = arith.constant 0 : index
    %247 = vector.load %arg16[%246, %c0_76] : memref<64x32xf32, #tpu.memory_space<vmem>>, vector<8x32xf32>
    tpu.vector_store %arg16[%246, %c0_76], %245 {strides = array<i32>} : memref<64x32xf32, #tpu.memory_space<vmem>>, vector<8x32xf32>,
    %c7_i32 = arith.constant 7 : i32
    %c8_i32_77 = arith.constant 8 : i32
    %248 = arith.muli %c7_i32, %c8_i32_77 : i32
    %249 = tpu.assume_multiple %248, 8 : i32
    %250 = arith.index_cast %249 : i32 to index
    %c0_78 = arith.constant 0 : index
    %251 = vector.load %arg17[%250, %c0_78] : memref<64x128xf32, #tpu.memory_space<vmem>>, vector<8x128xf32>
    %252 = arith.truncf %245 : vector<8x32xf32> to vector<8x32xbf16>
    %cst_79 = arith.constant dense<0.000000e+00> : vector<8x128xf32>
    %253 = tpu.matmul %252, %70, %cst_79 {dimension_numbers = #tpu.dot_dimension_numbers<[1], [0], [0], [1], [0, 0, 1, 1], [], []>} : vector<8x32xbf16>, vector<32x128xbf16>, vector<8x128xf32> -> vector<8x128xf32>
    %254 = arith.addf %251, %253 : vector<8x128xf32>
    %255 = vector.extract_strided_slice %254 {offsets = [0, 0], sizes = [8, 96], strides = [1, 1]} : vector<8x128xf32> to vector<8x96xf32>
    %256 = arith.negf %255 : vector<8x96xf32>
    %257 = math.exp %256 : vector<8x96xf32>
    %cst_80 = arith.constant 1.000000e+00 : f32
    %258 = vector.broadcast %cst_80 : f32 to vector<8x96xf32>
    %259 = arith.addf %258, %257 : vector<8x96xf32>
    %260 = arith.divf %258, %259 : vector<8x96xf32>
    %261 = vector.extract_strided_slice %254 {offsets = [0, 96], sizes = [8, 32], strides = [1, 1]} : vector<8x128xf32> to vector<8x32xf32>
    %262 = math.tanh %261 : vector<8x32xf32>
    %263 = vector.extract_strided_slice %260 {offsets = [0, 32], sizes = [8, 32], strides = [1, 1]} : vector<8x96xf32> to vector<8x32xf32>
    %264 = arith.mulf %263, %242 : vector<8x32xf32>
    %265 = vector.extract_strided_slice %260 {offsets = [0, 0], sizes = [8, 32], strides = [1, 1]} : vector<8x96xf32> to vector<8x32xf32>
    %266 = arith.mulf %265, %262 : vector<8x32xf32>
    %267 = arith.addf %264, %266 : vector<8x32xf32>
    %268 = vector.extract_strided_slice %260 {offsets = [0, 64], sizes = [8, 32], strides = [1, 1]} : vector<8x96xf32> to vector<8x32xf32>
    %269 = math.tanh %267 : vector<8x32xf32>
    %270 = arith.mulf %268, %269 : vector<8x32xf32>
    %271 = arith.index_cast %249 : i32 to index
    %c0_81 = arith.constant 0 : index
    %272 = vector.load %arg16[%271, %c0_81] : memref<64x32xf32, #tpu.memory_space<vmem>>, vector<8x32xf32>
    tpu.vector_store %arg16[%271, %c0_81], %270 {strides = array<i32>} : memref<64x32xf32, #tpu.memory_space<vmem>>, vector<8x32xf32>,
    %c8_i32_82 = arith.constant 8 : i32
    %c0_83 = arith.constant 0 : index
    %c0_84 = arith.constant 0 : index
    %273 = vector.load %arg16[%c0_83, %c0_84] : memref<64x32xf32, #tpu.memory_space<vmem>>, vector<64x32xf32>
    %274 = arith.truncf %273 : vector<64x32xf32> to vector<64x32xbf16>
    %c1 = arith.constant 1 : index
    %c0_85 = arith.constant 0 : index
    %c0_86 = arith.constant 0 : index
    %275 = vector.load %arg6[%c1, %c0_85, %c0_86] : memref<2x32x128xbf16, #tpu.memory_space<vmem>>, vector<1x32x128xbf16>
    %276 = vector.shape_cast %275 : vector<1x32x128xbf16> to vector<32x128xbf16>
    %cst_87 = arith.constant dense<0.000000e+00> : vector<64x128xf32>
    %277 = tpu.matmul %274, %276, %cst_87 {dimension_numbers = #tpu.dot_dimension_numbers<[1], [0], [0], [1], [0, 0, 1, 1], [], []>} : vector<64x32xbf16>, vector<32x128xbf16>, vector<64x128xf32> -> vector<64x128xf32>
    %c1_88 = arith.constant 1 : index
    %c0_89 = arith.constant 0 : index
    %c0_90 = arith.constant 0 : index
    %278 = vector.load %arg8[%c1_88, %c0_89, %c0_90] : memref<2x1x128xf32, #tpu.memory_space<vmem>>, vector<1x1x128xf32>
    %279 = vector.shape_cast %278 : vector<1x1x128xf32> to vector<1x128xf32>
    %280 = vector.broadcast %279 : vector<1x128xf32> to vector<64x128xf32>
    %281 = arith.addf %277, %280 : vector<64x128xf32>
    %c0_91 = arith.constant 0 : index
    %c0_92 = arith.constant 0 : index
    %282 = vector.load %arg17[%c0_91, %c0_92] : memref<64x128xf32, #tpu.memory_space<vmem>>, vector<64x128xf32>
    tpu.vector_store %arg17[%c0_91, %c0_92], %281 {strides = array<i32>} : memref<64x128xf32, #tpu.memory_space<vmem>>, vector<64x128xf32>,
    %c1_93 = arith.constant 1 : index
    %c0_94 = arith.constant 0 : index
    %c0_95 = arith.constant 0 : index
    %283 = vector.load %arg7[%c1_93, %c0_94, %c0_95] : memref<2x32x128xbf16, #tpu.memory_space<vmem>>, vector<1x32x128xbf16>
    %284 = vector.shape_cast %283 : vector<1x32x128xbf16> to vector<32x128xbf16>
    %cst_96 = arith.constant 0.000000e+00 : f32
    %285 = vector.broadcast %cst_96 : f32 to vector<8x32xf32>
    %cst_97 = arith.constant 0.000000e+00 : f32
    %286 = vector.broadcast %cst_97 : f32 to vector<8x32xf32>
    %c0_i32_98 = arith.constant 0 : i32
    %c8_i32_99 = arith.constant 8 : i32
    %287 = arith.muli %c0_i32_98, %c8_i32_99 : i32
    %288 = tpu.assume_multiple %287, 8 : i32
    %289 = arith.index_cast %288 : i32 to index
    %c0_100 = arith.constant 0 : index
    %290 = vector.load %arg17[%289, %c0_100] : memref<64x128xf32, #tpu.memory_space<vmem>>, vector<8x128xf32>
    %291 = arith.truncf %285 : vector<8x32xf32> to vector<8x32xbf16>
    %cst_101 = arith.constant dense<0.000000e+00> : vector<8x128xf32>
    %292 = tpu.matmul %291, %284, %cst_101 {dimension_numbers = #tpu.dot_dimension_numbers<[1], [0], [0], [1], [0, 0, 1, 1], [], []>} : vector<8x32xbf16>, vector<32x128xbf16>, vector<8x128xf32> -> vector<8x128xf32>
    %293 = arith.addf %290, %292 : vector<8x128xf32>
    %294 = vector.extract_strided_slice %293 {offsets = [0, 0], sizes = [8, 96], strides = [1, 1]} : vector<8x128xf32> to vector<8x96xf32>
    %295 = arith.negf %294 : vector<8x96xf32>
    %296 = math.exp %295 : vector<8x96xf32>
    %cst_102 = arith.constant 1.000000e+00 : f32
    %297 = vector.broadcast %cst_102 : f32 to vector<8x96xf32>
    %298 = arith.addf %297, %296 : vector<8x96xf32>
    %299 = arith.divf %297, %298 : vector<8x96xf32>
    %300 = vector.extract_strided_slice %293 {offsets = [0, 96], sizes = [8, 32], strides = [1, 1]} : vector<8x128xf32> to vector<8x32xf32>
    %301 = math.tanh %300 : vector<8x32xf32>
    %302 = vector.extract_strided_slice %299 {offsets = [0, 32], sizes = [8, 32], strides = [1, 1]} : vector<8x96xf32> to vector<8x32xf32>
    %303 = arith.mulf %302, %286 : vector<8x32xf32>
    %304 = vector.extract_strided_slice %299 {offsets = [0, 0], sizes = [8, 32], strides = [1, 1]} : vector<8x96xf32> to vector<8x32xf32>
    %305 = arith.mulf %304, %301 : vector<8x32xf32>
    %306 = arith.addf %303, %305 : vector<8x32xf32>
    %307 = vector.extract_strided_slice %299 {offsets = [0, 64], sizes = [8, 32], strides = [1, 1]} : vector<8x96xf32> to vector<8x32xf32>
    %308 = math.tanh %306 : vector<8x32xf32>
    %309 = arith.mulf %307, %308 : vector<8x32xf32>
    %310 = arith.index_cast %288 : i32 to index
    %c0_103 = arith.constant 0 : index
    %311 = vector.load %arg16[%310, %c0_103] : memref<64x32xf32, #tpu.memory_space<vmem>>, vector<8x32xf32>
    tpu.vector_store %arg16[%310, %c0_103], %309 {strides = array<i32>} : memref<64x32xf32, #tpu.memory_space<vmem>>, vector<8x32xf32>,
    %c1_i32_104 = arith.constant 1 : i32
    %c8_i32_105 = arith.constant 8 : i32
    %312 = arith.muli %c1_i32_104, %c8_i32_105 : i32
    %313 = tpu.assume_multiple %312, 8 : i32
    %314 = arith.index_cast %313 : i32 to index
    %c0_106 = arith.constant 0 : index
    %315 = vector.load %arg17[%314, %c0_106] : memref<64x128xf32, #tpu.memory_space<vmem>>, vector<8x128xf32>
    %316 = arith.truncf %309 : vector<8x32xf32> to vector<8x32xbf16>
    %cst_107 = arith.constant dense<0.000000e+00> : vector<8x128xf32>
    %317 = tpu.matmul %316, %284, %cst_107 {dimension_numbers = #tpu.dot_dimension_numbers<[1], [0], [0], [1], [0, 0, 1, 1], [], []>} : vector<8x32xbf16>, vector<32x128xbf16>, vector<8x128xf32> -> vector<8x128xf32>
    %318 = arith.addf %315, %317 : vector<8x128xf32>
    %319 = vector.extract_strided_slice %318 {offsets = [0, 0], sizes = [8, 96], strides = [1, 1]} : vector<8x128xf32> to vector<8x96xf32>
    %320 = arith.negf %319 : vector<8x96xf32>
    %321 = math.exp %320 : vector<8x96xf32>
    %cst_108 = arith.constant 1.000000e+00 : f32
    %322 = vector.broadcast %cst_108 : f32 to vector<8x96xf32>
    %323 = arith.addf %322, %321 : vector<8x96xf32>
    %324 = arith.divf %322, %323 : vector<8x96xf32>
    %325 = vector.extract_strided_slice %318 {offsets = [0, 96], sizes = [8, 32], strides = [1, 1]} : vector<8x128xf32> to vector<8x32xf32>
    %326 = math.tanh %325 : vector<8x32xf32>
    %327 = vector.extract_strided_slice %324 {offsets = [0, 32], sizes = [8, 32], strides = [1, 1]} : vector<8x96xf32> to vector<8x32xf32>
    %328 = arith.mulf %327, %306 : vector<8x32xf32>
    %329 = vector.extract_strided_slice %324 {offsets = [0, 0], sizes = [8, 32], strides = [1, 1]} : vector<8x96xf32> to vector<8x32xf32>
    %330 = arith.mulf %329, %326 : vector<8x32xf32>
    %331 = arith.addf %328, %330 : vector<8x32xf32>
    %332 = vector.extract_strided_slice %324 {offsets = [0, 64], sizes = [8, 32], strides = [1, 1]} : vector<8x96xf32> to vector<8x32xf32>
    %333 = math.tanh %331 : vector<8x32xf32>
    %334 = arith.mulf %332, %333 : vector<8x32xf32>
    %335 = arith.index_cast %313 : i32 to index
    %c0_109 = arith.constant 0 : index
    %336 = vector.load %arg16[%335, %c0_109] : memref<64x32xf32, #tpu.memory_space<vmem>>, vector<8x32xf32>
    tpu.vector_store %arg16[%335, %c0_109], %334 {strides = array<i32>} : memref<64x32xf32, #tpu.memory_space<vmem>>, vector<8x32xf32>,
    %c2_i32_110 = arith.constant 2 : i32
    %c8_i32_111 = arith.constant 8 : i32
    %337 = arith.muli %c2_i32_110, %c8_i32_111 : i32
    %338 = tpu.assume_multiple %337, 8 : i32
    %339 = arith.index_cast %338 : i32 to index
    %c0_112 = arith.constant 0 : index
    %340 = vector.load %arg17[%339, %c0_112] : memref<64x128xf32, #tpu.memory_space<vmem>>, vector<8x128xf32>
    %341 = arith.truncf %334 : vector<8x32xf32> to vector<8x32xbf16>
    %cst_113 = arith.constant dense<0.000000e+00> : vector<8x128xf32>
    %342 = tpu.matmul %341, %284, %cst_113 {dimension_numbers = #tpu.dot_dimension_numbers<[1], [0], [0], [1], [0, 0, 1, 1], [], []>} : vector<8x32xbf16>, vector<32x128xbf16>, vector<8x128xf32> -> vector<8x128xf32>
    %343 = arith.addf %340, %342 : vector<8x128xf32>
    %344 = vector.extract_strided_slice %343 {offsets = [0, 0], sizes = [8, 96], strides = [1, 1]} : vector<8x128xf32> to vector<8x96xf32>
    %345 = arith.negf %344 : vector<8x96xf32>
    %346 = math.exp %345 : vector<8x96xf32>
    %cst_114 = arith.constant 1.000000e+00 : f32
    %347 = vector.broadcast %cst_114 : f32 to vector<8x96xf32>
    %348 = arith.addf %347, %346 : vector<8x96xf32>
    %349 = arith.divf %347, %348 : vector<8x96xf32>
    %350 = vector.extract_strided_slice %343 {offsets = [0, 96], sizes = [8, 32], strides = [1, 1]} : vector<8x128xf32> to vector<8x32xf32>
    %351 = math.tanh %350 : vector<8x32xf32>
    %352 = vector.extract_strided_slice %349 {offsets = [0, 32], sizes = [8, 32], strides = [1, 1]} : vector<8x96xf32> to vector<8x32xf32>
    %353 = arith.mulf %352, %331 : vector<8x32xf32>
    %354 = vector.extract_strided_slice %349 {offsets = [0, 0], sizes = [8, 32], strides = [1, 1]} : vector<8x96xf32> to vector<8x32xf32>
    %355 = arith.mulf %354, %351 : vector<8x32xf32>
    %356 = arith.addf %353, %355 : vector<8x32xf32>
    %357 = vector.extract_strided_slice %349 {offsets = [0, 64], sizes = [8, 32], strides = [1, 1]} : vector<8x96xf32> to vector<8x32xf32>
    %358 = math.tanh %356 : vector<8x32xf32>
    %359 = arith.mulf %357, %358 : vector<8x32xf32>
    %360 = arith.index_cast %338 : i32 to index
    %c0_115 = arith.constant 0 : index
    %361 = vector.load %arg16[%360, %c0_115] : memref<64x32xf32, #tpu.memory_space<vmem>>, vector<8x32xf32>
    tpu.vector_store %arg16[%360, %c0_115], %359 {strides = array<i32>} : memref<64x32xf32, #tpu.memory_space<vmem>>, vector<8x32xf32>,
    %c3_i32_116 = arith.constant 3 : i32
    %c8_i32_117 = arith.constant 8 : i32
    %362 = arith.muli %c3_i32_116, %c8_i32_117 : i32
    %363 = tpu.assume_multiple %362, 8 : i32
    %364 = arith.index_cast %363 : i32 to index
    %c0_118 = arith.constant 0 : index
    %365 = vector.load %arg17[%364, %c0_118] : memref<64x128xf32, #tpu.memory_space<vmem>>, vector<8x128xf32>
    %366 = arith.truncf %359 : vector<8x32xf32> to vector<8x32xbf16>
    %cst_119 = arith.constant dense<0.000000e+00> : vector<8x128xf32>
    %367 = tpu.matmul %366, %284, %cst_119 {dimension_numbers = #tpu.dot_dimension_numbers<[1], [0], [0], [1], [0, 0, 1, 1], [], []>} : vector<8x32xbf16>, vector<32x128xbf16>, vector<8x128xf32> -> vector<8x128xf32>
    %368 = arith.addf %365, %367 : vector<8x128xf32>
    %369 = vector.extract_strided_slice %368 {offsets = [0, 0], sizes = [8, 96], strides = [1, 1]} : vector<8x128xf32> to vector<8x96xf32>
    %370 = arith.negf %369 : vector<8x96xf32>
    %371 = math.exp %370 : vector<8x96xf32>
    %cst_120 = arith.constant 1.000000e+00 : f32
    %372 = vector.broadcast %cst_120 : f32 to vector<8x96xf32>
    %373 = arith.addf %372, %371 : vector<8x96xf32>
    %374 = arith.divf %372, %373 : vector<8x96xf32>
    %375 = vector.extract_strided_slice %368 {offsets = [0, 96], sizes = [8, 32], strides = [1, 1]} : vector<8x128xf32> to vector<8x32xf32>
    %376 = math.tanh %375 : vector<8x32xf32>
    %377 = vector.extract_strided_slice %374 {offsets = [0, 32], sizes = [8, 32], strides = [1, 1]} : vector<8x96xf32> to vector<8x32xf32>
    %378 = arith.mulf %377, %356 : vector<8x32xf32>
    %379 = vector.extract_strided_slice %374 {offsets = [0, 0], sizes = [8, 32], strides = [1, 1]} : vector<8x96xf32> to vector<8x32xf32>
    %380 = arith.mulf %379, %376 : vector<8x32xf32>
    %381 = arith.addf %378, %380 : vector<8x32xf32>
    %382 = vector.extract_strided_slice %374 {offsets = [0, 64], sizes = [8, 32], strides = [1, 1]} : vector<8x96xf32> to vector<8x32xf32>
    %383 = math.tanh %381 : vector<8x32xf32>
    %384 = arith.mulf %382, %383 : vector<8x32xf32>
    %385 = arith.index_cast %363 : i32 to index
    %c0_121 = arith.constant 0 : index
    %386 = vector.load %arg16[%385, %c0_121] : memref<64x32xf32, #tpu.memory_space<vmem>>, vector<8x32xf32>
    tpu.vector_store %arg16[%385, %c0_121], %384 {strides = array<i32>} : memref<64x32xf32, #tpu.memory_space<vmem>>, vector<8x32xf32>,
    %c4_i32_122 = arith.constant 4 : i32
    %c8_i32_123 = arith.constant 8 : i32
    %387 = arith.muli %c4_i32_122, %c8_i32_123 : i32
    %388 = tpu.assume_multiple %387, 8 : i32
    %389 = arith.index_cast %388 : i32 to index
    %c0_124 = arith.constant 0 : index
    %390 = vector.load %arg17[%389, %c0_124] : memref<64x128xf32, #tpu.memory_space<vmem>>, vector<8x128xf32>
    %391 = arith.truncf %384 : vector<8x32xf32> to vector<8x32xbf16>
    %cst_125 = arith.constant dense<0.000000e+00> : vector<8x128xf32>
    %392 = tpu.matmul %391, %284, %cst_125 {dimension_numbers = #tpu.dot_dimension_numbers<[1], [0], [0], [1], [0, 0, 1, 1], [], []>} : vector<8x32xbf16>, vector<32x128xbf16>, vector<8x128xf32> -> vector<8x128xf32>
    %393 = arith.addf %390, %392 : vector<8x128xf32>
    %394 = vector.extract_strided_slice %393 {offsets = [0, 0], sizes = [8, 96], strides = [1, 1]} : vector<8x128xf32> to vector<8x96xf32>
    %395 = arith.negf %394 : vector<8x96xf32>
    %396 = math.exp %395 : vector<8x96xf32>
    %cst_126 = arith.constant 1.000000e+00 : f32
    %397 = vector.broadcast %cst_126 : f32 to vector<8x96xf32>
    %398 = arith.addf %397, %396 : vector<8x96xf32>
    %399 = arith.divf %397, %398 : vector<8x96xf32>
    %400 = vector.extract_strided_slice %393 {offsets = [0, 96], sizes = [8, 32], strides = [1, 1]} : vector<8x128xf32> to vector<8x32xf32>
    %401 = math.tanh %400 : vector<8x32xf32>
    %402 = vector.extract_strided_slice %399 {offsets = [0, 32], sizes = [8, 32], strides = [1, 1]} : vector<8x96xf32> to vector<8x32xf32>
    %403 = arith.mulf %402, %381 : vector<8x32xf32>
    %404 = vector.extract_strided_slice %399 {offsets = [0, 0], sizes = [8, 32], strides = [1, 1]} : vector<8x96xf32> to vector<8x32xf32>
    %405 = arith.mulf %404, %401 : vector<8x32xf32>
    %406 = arith.addf %403, %405 : vector<8x32xf32>
    %407 = vector.extract_strided_slice %399 {offsets = [0, 64], sizes = [8, 32], strides = [1, 1]} : vector<8x96xf32> to vector<8x32xf32>
    %408 = math.tanh %406 : vector<8x32xf32>
    %409 = arith.mulf %407, %408 : vector<8x32xf32>
    %410 = arith.index_cast %388 : i32 to index
    %c0_127 = arith.constant 0 : index
    %411 = vector.load %arg16[%410, %c0_127] : memref<64x32xf32, #tpu.memory_space<vmem>>, vector<8x32xf32>
    tpu.vector_store %arg16[%410, %c0_127], %409 {strides = array<i32>} : memref<64x32xf32, #tpu.memory_space<vmem>>, vector<8x32xf32>,
    %c5_i32_128 = arith.constant 5 : i32
    %c8_i32_129 = arith.constant 8 : i32
    %412 = arith.muli %c5_i32_128, %c8_i32_129 : i32
    %413 = tpu.assume_multiple %412, 8 : i32
    %414 = arith.index_cast %413 : i32 to index
    %c0_130 = arith.constant 0 : index
    %415 = vector.load %arg17[%414, %c0_130] : memref<64x128xf32, #tpu.memory_space<vmem>>, vector<8x128xf32>
    %416 = arith.truncf %409 : vector<8x32xf32> to vector<8x32xbf16>
    %cst_131 = arith.constant dense<0.000000e+00> : vector<8x128xf32>
    %417 = tpu.matmul %416, %284, %cst_131 {dimension_numbers = #tpu.dot_dimension_numbers<[1], [0], [0], [1], [0, 0, 1, 1], [], []>} : vector<8x32xbf16>, vector<32x128xbf16>, vector<8x128xf32> -> vector<8x128xf32>
    %418 = arith.addf %415, %417 : vector<8x128xf32>
    %419 = vector.extract_strided_slice %418 {offsets = [0, 0], sizes = [8, 96], strides = [1, 1]} : vector<8x128xf32> to vector<8x96xf32>
    %420 = arith.negf %419 : vector<8x96xf32>
    %421 = math.exp %420 : vector<8x96xf32>
    %cst_132 = arith.constant 1.000000e+00 : f32
    %422 = vector.broadcast %cst_132 : f32 to vector<8x96xf32>
    %423 = arith.addf %422, %421 : vector<8x96xf32>
    %424 = arith.divf %422, %423 : vector<8x96xf32>
    %425 = vector.extract_strided_slice %418 {offsets = [0, 96], sizes = [8, 32], strides = [1, 1]} : vector<8x128xf32> to vector<8x32xf32>
    %426 = math.tanh %425 : vector<8x32xf32>
    %427 = vector.extract_strided_slice %424 {offsets = [0, 32], sizes = [8, 32], strides = [1, 1]} : vector<8x96xf32> to vector<8x32xf32>
    %428 = arith.mulf %427, %406 : vector<8x32xf32>
    %429 = vector.extract_strided_slice %424 {offsets = [0, 0], sizes = [8, 32], strides = [1, 1]} : vector<8x96xf32> to vector<8x32xf32>
    %430 = arith.mulf %429, %426 : vector<8x32xf32>
    %431 = arith.addf %428, %430 : vector<8x32xf32>
    %432 = vector.extract_strided_slice %424 {offsets = [0, 64], sizes = [8, 32], strides = [1, 1]} : vector<8x96xf32> to vector<8x32xf32>
    %433 = math.tanh %431 : vector<8x32xf32>
    %434 = arith.mulf %432, %433 : vector<8x32xf32>
    %435 = arith.index_cast %413 : i32 to index
    %c0_133 = arith.constant 0 : index
    %436 = vector.load %arg16[%435, %c0_133] : memref<64x32xf32, #tpu.memory_space<vmem>>, vector<8x32xf32>
    tpu.vector_store %arg16[%435, %c0_133], %434 {strides = array<i32>} : memref<64x32xf32, #tpu.memory_space<vmem>>, vector<8x32xf32>,
    %c6_i32_134 = arith.constant 6 : i32
    %c8_i32_135 = arith.constant 8 : i32
    %437 = arith.muli %c6_i32_134, %c8_i32_135 : i32
    %438 = tpu.assume_multiple %437, 8 : i32
    %439 = arith.index_cast %438 : i32 to index
    %c0_136 = arith.constant 0 : index
    %440 = vector.load %arg17[%439, %c0_136] : memref<64x128xf32, #tpu.memory_space<vmem>>, vector<8x128xf32>
    %441 = arith.truncf %434 : vector<8x32xf32> to vector<8x32xbf16>
    %cst_137 = arith.constant dense<0.000000e+00> : vector<8x128xf32>
    %442 = tpu.matmul %441, %284, %cst_137 {dimension_numbers = #tpu.dot_dimension_numbers<[1], [0], [0], [1], [0, 0, 1, 1], [], []>} : vector<8x32xbf16>, vector<32x128xbf16>, vector<8x128xf32> -> vector<8x128xf32>
    %443 = arith.addf %440, %442 : vector<8x128xf32>
    %444 = vector.extract_strided_slice %443 {offsets = [0, 0], sizes = [8, 96], strides = [1, 1]} : vector<8x128xf32> to vector<8x96xf32>
    %445 = arith.negf %444 : vector<8x96xf32>
    %446 = math.exp %445 : vector<8x96xf32>
    %cst_138 = arith.constant 1.000000e+00 : f32
    %447 = vector.broadcast %cst_138 : f32 to vector<8x96xf32>
    %448 = arith.addf %447, %446 : vector<8x96xf32>
    %449 = arith.divf %447, %448 : vector<8x96xf32>
    %450 = vector.extract_strided_slice %443 {offsets = [0, 96], sizes = [8, 32], strides = [1, 1]} : vector<8x128xf32> to vector<8x32xf32>
    %451 = math.tanh %450 : vector<8x32xf32>
    %452 = vector.extract_strided_slice %449 {offsets = [0, 32], sizes = [8, 32], strides = [1, 1]} : vector<8x96xf32> to vector<8x32xf32>
    %453 = arith.mulf %452, %431 : vector<8x32xf32>
    %454 = vector.extract_strided_slice %449 {offsets = [0, 0], sizes = [8, 32], strides = [1, 1]} : vector<8x96xf32> to vector<8x32xf32>
    %455 = arith.mulf %454, %451 : vector<8x32xf32>
    %456 = arith.addf %453, %455 : vector<8x32xf32>
    %457 = vector.extract_strided_slice %449 {offsets = [0, 64], sizes = [8, 32], strides = [1, 1]} : vector<8x96xf32> to vector<8x32xf32>
    %458 = math.tanh %456 : vector<8x32xf32>
    %459 = arith.mulf %457, %458 : vector<8x32xf32>
    %460 = arith.index_cast %438 : i32 to index
    %c0_139 = arith.constant 0 : index
    %461 = vector.load %arg16[%460, %c0_139] : memref<64x32xf32, #tpu.memory_space<vmem>>, vector<8x32xf32>
    tpu.vector_store %arg16[%460, %c0_139], %459 {strides = array<i32>} : memref<64x32xf32, #tpu.memory_space<vmem>>, vector<8x32xf32>,
    %c7_i32_140 = arith.constant 7 : i32
    %c8_i32_141 = arith.constant 8 : i32
    %462 = arith.muli %c7_i32_140, %c8_i32_141 : i32
    %463 = tpu.assume_multiple %462, 8 : i32
    %464 = arith.index_cast %463 : i32 to index
    %c0_142 = arith.constant 0 : index
    %465 = vector.load %arg17[%464, %c0_142] : memref<64x128xf32, #tpu.memory_space<vmem>>, vector<8x128xf32>
    %466 = arith.truncf %459 : vector<8x32xf32> to vector<8x32xbf16>
    %cst_143 = arith.constant dense<0.000000e+00> : vector<8x128xf32>
    %467 = tpu.matmul %466, %284, %cst_143 {dimension_numbers = #tpu.dot_dimension_numbers<[1], [0], [0], [1], [0, 0, 1, 1], [], []>} : vector<8x32xbf16>, vector<32x128xbf16>, vector<8x128xf32> -> vector<8x128xf32>
    %468 = arith.addf %465, %467 : vector<8x128xf32>
    %469 = vector.extract_strided_slice %468 {offsets = [0, 0], sizes = [8, 96], strides = [1, 1]} : vector<8x128xf32> to vector<8x96xf32>
    %470 = arith.negf %469 : vector<8x96xf32>
    %471 = math.exp %470 : vector<8x96xf32>
    %cst_144 = arith.constant 1.000000e+00 : f32
    %472 = vector.broadcast %cst_144 : f32 to vector<8x96xf32>
    %473 = arith.addf %472, %471 : vector<8x96xf32>
    %474 = arith.divf %472, %473 : vector<8x96xf32>
    %475 = vector.extract_strided_slice %468 {offsets = [0, 96], sizes = [8, 32], strides = [1, 1]} : vector<8x128xf32> to vector<8x32xf32>
    %476 = math.tanh %475 : vector<8x32xf32>
    %477 = vector.extract_strided_slice %474 {offsets = [0, 32], sizes = [8, 32], strides = [1, 1]} : vector<8x96xf32> to vector<8x32xf32>
    %478 = arith.mulf %477, %456 : vector<8x32xf32>
    %479 = vector.extract_strided_slice %474 {offsets = [0, 0], sizes = [8, 32], strides = [1, 1]} : vector<8x96xf32> to vector<8x32xf32>
    %480 = arith.mulf %479, %476 : vector<8x32xf32>
    %481 = arith.addf %478, %480 : vector<8x32xf32>
    %482 = vector.extract_strided_slice %474 {offsets = [0, 64], sizes = [8, 32], strides = [1, 1]} : vector<8x96xf32> to vector<8x32xf32>
    %483 = math.tanh %481 : vector<8x32xf32>
    %484 = arith.mulf %482, %483 : vector<8x32xf32>
    %485 = arith.index_cast %463 : i32 to index
    %c0_145 = arith.constant 0 : index
    %486 = vector.load %arg16[%485, %c0_145] : memref<64x32xf32, #tpu.memory_space<vmem>>, vector<8x32xf32>
    tpu.vector_store %arg16[%485, %c0_145], %484 {strides = array<i32>} : memref<64x32xf32, #tpu.memory_space<vmem>>, vector<8x32xf32>,
    %c8_i32_146 = arith.constant 8 : i32
    %487 = arith.truncf %484 : vector<8x32xf32> to vector<8x32xbf16>
    %c0_147 = arith.constant 0 : index
    %c0_148 = arith.constant 0 : index
    %488 = vector.load %arg9[%c0_147, %c0_148] : memref<32x32xbf16, #tpu.memory_space<vmem>>, vector<32x32xbf16>
    %cst_149 = arith.constant dense<0.000000e+00> : vector<8x32xf32>
    %489 = tpu.matmul %487, %488, %cst_149 {dimension_numbers = #tpu.dot_dimension_numbers<[1], [0], [0], [1], [0, 0, 1, 1], [], []>} : vector<8x32xbf16>, vector<32x32xbf16>, vector<8x32xf32> -> vector<8x32xf32>
    %c0_150 = arith.constant 0 : index
    %c0_151 = arith.constant 0 : index
    %490 = vector.load %arg10[%c0_150, %c0_151] : memref<1x32xf32, #tpu.memory_space<vmem>>, vector<1x32xf32>
    %491 = vector.broadcast %490 : vector<1x32xf32> to vector<8x32xf32>
    %492 = arith.addf %489, %491 : vector<8x32xf32>
    %c0_152 = arith.constant 0 : index
    %c0_153 = arith.constant 0 : index
    %493 = vector.load %arg11[%c0_152, %c0_153] : memref<1x32xf32, #tpu.memory_space<vmem>>, vector<1x32xf32>
    %c0_154 = arith.constant 0 : index
    %c0_155 = arith.constant 0 : index
    %494 = vector.load %arg12[%c0_154, %c0_155] : memref<1x32xf32, #tpu.memory_space<vmem>>, vector<1x32xf32>
    %cst_156 = arith.constant dense<0.000000e+00> : vector<8xf32>
    %495 = vector.multi_reduction <add>, %492, %cst_156 [1] : vector<8x32xf32> to vector<8xf32>
    %496 = vector.shape_cast %495 : vector<8xf32> to vector<8x1xf32>
    %cst_157 = arith.constant 3.200000e+01 : f32
    %497 = vector.broadcast %cst_157 : f32 to vector<8x1xf32>
    %498 = arith.divf %496, %497 : vector<8x1xf32>
    %499 = vector.broadcast %498 : vector<8x1xf32> to vector<8x32xf32>
    %500 = arith.subf %492, %499 : vector<8x32xf32>
    %501 = arith.mulf %500, %500 : vector<8x32xf32>
    %cst_158 = arith.constant dense<0.000000e+00> : vector<8xf32>
    %502 = vector.multi_reduction <add>, %501, %cst_158 [1] : vector<8x32xf32> to vector<8xf32>
    %503 = vector.shape_cast %502 : vector<8xf32> to vector<8x1xf32>
    %cst_159 = arith.constant 3.200000e+01 : f32
    %504 = vector.broadcast %cst_159 : f32 to vector<8x1xf32>
    %505 = arith.divf %503, %504 : vector<8x1xf32>
    %506 = vector.broadcast %498 : vector<8x1xf32> to vector<8x32xf32>
    %507 = arith.subf %492, %506 : vector<8x32xf32>
    %cst_160 = arith.constant 9.99999974E-6 : f32
    %508 = vector.broadcast %cst_160 : f32 to vector<8x1xf32>
    %509 = arith.addf %505, %508 : vector<8x1xf32>
    %510 = math.rsqrt %509 : vector<8x1xf32>
    %511 = vector.broadcast %510 : vector<8x1xf32> to vector<8x32xf32>
    %512 = arith.mulf %507, %511 : vector<8x32xf32>
    %513 = vector.broadcast %493 : vector<1x32xf32> to vector<8x32xf32>
    %514 = arith.mulf %512, %513 : vector<8x32xf32>
    %515 = vector.broadcast %494 : vector<1x32xf32> to vector<8x32xf32>
    %516 = arith.addf %514, %515 : vector<8x32xf32>
    %cst_161 = arith.constant 0.000000e+00 : f32
    %517 = vector.broadcast %cst_161 : f32 to vector<8x32xf32>
    %518 = arith.maximumf %516, %517 : vector<8x32xf32>
    %519 = arith.truncf %518 : vector<8x32xf32> to vector<8x32xbf16>
    %c0_162 = arith.constant 0 : index
    %c0_163 = arith.constant 0 : index
    %520 = vector.load %arg13[%c0_162, %c0_163] : memref<32x2xbf16, #tpu.memory_space<vmem>>, vector<32x2xbf16>
    %cst_164 = arith.constant dense<0.000000e+00> : vector<8x2xf32>
    %521 = tpu.matmul %519, %520, %cst_164 {dimension_numbers = #tpu.dot_dimension_numbers<[1], [0], [0], [1], [0, 0, 1, 1], [], []>} : vector<8x32xbf16>, vector<32x2xbf16>, vector<8x2xf32> -> vector<8x2xf32>
    %c0_165 = arith.constant 0 : index
    %c0_166 = arith.constant 0 : index
    %522 = vector.load %arg14[%c0_165, %c0_166] : memref<1x2xf32, #tpu.memory_space<vmem>>, vector<1x2xf32>
    %523 = vector.broadcast %522 : vector<1x2xf32> to vector<8x2xf32>
    %524 = arith.addf %521, %523 : vector<8x2xf32>
    %c0_167 = arith.constant 0 : index
    %c0_168 = arith.constant 0 : index
    %525 = vector.load %arg15[%c0_167, %c0_168] : memref<8x2xf32, #tpu.memory_space<vmem>>, vector<8x2xf32>
    tpu.vector_store %arg15[%c0_167, %c0_168], %524 {strides = array<i32>} : memref<8x2xf32, #tpu.memory_space<vmem>>, vector<8x2xf32>,
    return
  }
  func.func @transform_0(%arg0: i32) -> (i32, i32, i32) {
    %c0_i32 = arith.constant 0 : i32
    %c0_i32_0 = arith.constant 0 : i32
    %c0_i32_1 = arith.constant 0 : i32
    return %arg0, %c0_i32, %c0_i32_0 : i32, i32, i32
  }
  func.func @transform_1(%arg0: i32) -> (i32, i32) {
    %c0_i32 = arith.constant 0 : i32
    %c0_i32_0 = arith.constant 0 : i32
    %c0_i32_1 = arith.constant 0 : i32
    return %c0_i32, %c0_i32_0 : i32, i32
  }
  func.func @transform_2(%arg0: i32) -> (i32, i32) {
    %c0_i32 = arith.constant 0 : i32
    %c0_i32_0 = arith.constant 0 : i32
    %c0_i32_1 = arith.constant 0 : i32
    return %c0_i32, %c0_i32_0 : i32, i32
  }
  func.func @transform_3(%arg0: i32) -> (i32, i32) {
    %c0_i32 = arith.constant 0 : i32
    %c0_i32_0 = arith.constant 0 : i32
    %c0_i32_1 = arith.constant 0 : i32
    return %c0_i32, %c0_i32_0 : i32, i32
  }
  func.func @transform_4(%arg0: i32) -> (i32, i32) {
    %c0_i32 = arith.constant 0 : i32
    %c0_i32_0 = arith.constant 0 : i32
    %c0_i32_1 = arith.constant 0 : i32
    return %c0_i32, %c0_i32_0 : i32, i32
  }
  func.func @transform_5(%arg0: i32) -> (i32, i32, i32) {
    %c0_i32 = arith.constant 0 : i32
    %c0_i32_0 = arith.constant 0 : i32
    %c0_i32_1 = arith.constant 0 : i32
    %c0_i32_2 = arith.constant 0 : i32
    return %c0_i32, %c0_i32_0, %c0_i32_1 : i32, i32, i32
  }
  func.func @transform_6(%arg0: i32) -> (i32, i32, i32) {
    %c0_i32 = arith.constant 0 : i32
    %c0_i32_0 = arith.constant 0 : i32
    %c0_i32_1 = arith.constant 0 : i32
    %c0_i32_2 = arith.constant 0 : i32
    return %c0_i32, %c0_i32_0, %c0_i32_1 : i32, i32, i32
  }
  func.func @transform_7(%arg0: i32) -> (i32, i32, i32) {
    %c0_i32 = arith.constant 0 : i32
    %c0_i32_0 = arith.constant 0 : i32
    %c0_i32_1 = arith.constant 0 : i32
    %c0_i32_2 = arith.constant 0 : i32
    return %c0_i32, %c0_i32_0, %c0_i32_1 : i32, i32, i32
  }
  func.func @transform_8(%arg0: i32) -> (i32, i32) {
    %c0_i32 = arith.constant 0 : i32
    %c0_i32_0 = arith.constant 0 : i32
    %c0_i32_1 = arith.constant 0 : i32
    return %c0_i32, %c0_i32_0 : i32, i32
  }
  func.func @transform_9(%arg0: i32) -> (i32, i32) {
    %c0_i32 = arith.constant 0 : i32
    %c0_i32_0 = arith.constant 0 : i32
    %c0_i32_1 = arith.constant 0 : i32
    return %c0_i32, %c0_i32_0 : i32, i32
  }
  func.func @transform_10(%arg0: i32) -> (i32, i32) {
    %c0_i32 = arith.constant 0 : i32
    %c0_i32_0 = arith.constant 0 : i32
    %c0_i32_1 = arith.constant 0 : i32
    return %c0_i32, %c0_i32_0 : i32, i32
  }
  func.func @transform_11(%arg0: i32) -> (i32, i32) {
    %c0_i32 = arith.constant 0 : i32
    %c0_i32_0 = arith.constant 0 : i32
    %c0_i32_1 = arith.constant 0 : i32
    return %c0_i32, %c0_i32_0 : i32, i32
  }
  func.func @transform_12(%arg0: i32) -> (i32, i32) {
    %c0_i32 = arith.constant 0 : i32
    %c0_i32_0 = arith.constant 0 : i32
    %c0_i32_1 = arith.constant 0 : i32
    return %c0_i32, %c0_i32_0 : i32, i32
  }
  func.func @transform_13(%arg0: i32) -> (i32, i32) {
    %c0_i32 = arith.constant 0 : i32
    %c0_i32_0 = arith.constant 0 : i32
    %c0_i32_1 = arith.constant 0 : i32
    return %c0_i32, %c0_i32_0 : i32, i32
  }
  func.func @transform_14(%arg0: i32) -> (i32, i32) {
    %c0_i32 = arith.constant 0 : i32
    %c0_i32_0 = arith.constant 0 : i32
    return %arg0, %c0_i32 : i32, i32
  }
}

</mosaic_0001>

<llo_original>
// kernel: tpu_custom_call.1
$region0: #{tpu_custom_call.1}
  #allocation0 [shape = 'u32[]', space=smem, size = 0x4, offset = 0x4, fixed_abs, tag = 'smem constant byte address 0x4 - core index']
  #allocation1 [shape = 'u32[72,128]{1,0:T(1,128)}', space=vmem, size = 0x9000, scoped, tag = 'internal scratch']
  #allocation2 [shape = 'f32[64,32]{1,0:T(8,128)}', space=vmem, size = 0x8000, scoped, tag = 'scratch operand']
  #allocation3 [shape = 'f32[64,128]{1,0:T(8,128)}', space=vmem, size = 0x8000, scoped, tag = 'scratch operand']
  %s0 = inlined_call_operand.vmem [shape: bf16[1,64,28], index: 0, kind: input, shape index: {}]
  %s1 = inlined_call_operand.vmem [shape: bf16[28,32], index: 1, kind: input, shape index: {}]
  %s2 = inlined_call_operand.vmem [shape: f32[1,32], index: 2, kind: input, shape index: {}]
  %s3 = inlined_call_operand.hbm [shape: f32[1,32], index: 3, kind: input, shape index: {}]
  %s4 = inlined_call_operand.hbm [shape: f32[1,32], index: 4, kind: input, shape index: {}]
  %s5 = inlined_call_operand.vmem [shape: bf16[2,32,128], index: 5, kind: input, shape index: {}]
  %s6 = inlined_call_operand.hbm [shape: bf16[2,32,128], index: 6, kind: input, shape index: {}]
  %s7 = inlined_call_operand.vmem [shape: f32[2,1,128], index: 7, kind: input, shape index: {}]
  %s8 = inlined_call_operand.hbm [shape: bf16[32,32], index: 8, kind: input, shape index: {}]
  %s9 = inlined_call_operand.vmem [shape: f32[1,32], index: 9, kind: input, shape index: {}]
  %s10 = inlined_call_operand.vmem [shape: f32[1,32], index: 10, kind: input, shape index: {}]
  %s11 = inlined_call_operand.vmem [shape: f32[1,32], index: 11, kind: input, shape index: {}]
  %s12 = inlined_call_operand.vmem [shape: bf16[32,2], index: 12, kind: input, shape index: {}]
  %s13 = inlined_call_operand.vmem [shape: f32[1,2], index: 13, kind: input, shape index: {}]
  %s14 = inlined_call_operand.vmem [shape: f32[8,2], index: 14, kind: output, shape index: {}]
  %s15 = sld [smem:[#allocation0]]
  $region82: #{tpu_custom_call.1} parent=0
    _
  %s17 = ssub.s32 1, %s15
  %s18 = scalar_select 0, %s17, %s15
  $region1: #{tpu_custom_call.1} parent=0
    #allocation4 [shape = 'u8[512]{0}', space=vmem, size = 0x400, scoped, tag = 'input window, operand 3, single buffered']
    #allocation5 [shape = 's32[1]{0}', space=sflag, size = 0x4, scoped, tag = 'scoped memory for tpu_custom_call.1']
    #allocation6 [shape = 'u8[512]{0}', space=vmem, size = 0x400, scoped, tag = 'input window, operand 4, single buffered']
    #allocation7 [shape = 's32[1]{0}', space=sflag, size = 0x4, scoped, tag = 'scoped memory for tpu_custom_call.1']
    #allocation8 [shape = 'u8[16384]{0}', space=vmem, size = 0x4000, scoped, tag = 'input window, operand 6, single buffered']
    #allocation9 [shape = 'u8[8192]{0}', space=vmem, size = 0x2000, scoped, tag = 'input window, operand 8, single buffered']
    #allocation10 [shape = 's32[1]{0}', space=sflag, size = 0x4, scoped, tag = 'scoped memory for tpu_custom_call.1']
    %19 = vsyncpa [#allocation5], 0
    %20 = vsyncpa [#allocation7], 0
    %21 = vsyncpa [#allocation10], 0
    // Predicated region
    $region2: #{tpu_custom_call.1} parent=1 // pred_check
      _
    $region3: #{tpu_custom_call.1} parent=1 // pred_check_branch
      %23 = sbr.rel (0) target = $region5
    $region4: #{tpu_custom_call.1} parent=1 // pred_region
      _
    $region5: #{tpu_custom_call.1} parent=1 // pred_fallthru
      _
    // Predicated region
    $region6: #{tpu_custom_call.1} parent=1 // pred_check
      _
    $region7: #{tpu_custom_call.1} parent=1 // pred_check_branch
      %25 = sbr.rel (0) target = $region9
    $region8: #{tpu_custom_call.1} parent=1 // pred_region
      _
    $region9: #{tpu_custom_call.1} parent=1 // pred_fallthru
      _
    // Predicated region
    $region10: #{tpu_custom_call.1} parent=1 // pred_check
      _
    $region11: #{tpu_custom_call.1} parent=1 // pred_check_branch
      %27 = sbr.rel (0) target = $region13
    $region12: #{tpu_custom_call.1} parent=1 // pred_region
      _
    $region13: #{tpu_custom_call.1} parent=1 // pred_fallthru
      _
    // Predicated region
    $region14: #{tpu_custom_call.1} parent=1 // pred_check
      _
    $region15: #{tpu_custom_call.1} parent=1 // pred_check_branch
      %29 = sbr.rel (0) target = $region17
    $region16: #{tpu_custom_call.1} parent=1 // pred_region
      %31 = vsyncadd [#allocation5], 0
      %s33 = sshll.u32 %s3, 4
      %s34 = int_to_ptr.hbm [resolvable:$true] %s33
      %s35 = sshll.u32 [#allocation4], 4
      %s36 = int_to_ptr.vmem [resolvable:$true] %s35
      %38 = dma.hbm_to_vmem [thread:$0]  %s34, 16, %s36, [#allocation5]
    $region17: #{tpu_custom_call.1} parent=1 // pred_fallthru
      _
    // Predicated region
    $region18: #{tpu_custom_call.1} parent=1 // pred_check
      _
    $region19: #{tpu_custom_call.1} parent=1 // pred_check_branch
      %40 = sbr.rel (0) target = $region21
    $region20: #{tpu_custom_call.1} parent=1 // pred_region
      %42 = vsyncadd [#allocation7], 0
      %s44 = sshll.u32 %s4, 4
      %s45 = int_to_ptr.hbm [resolvable:$true] %s44
      %s46 = sshll.u32 [#allocation6], 4
      %s47 = int_to_ptr.vmem [resolvable:$true] %s46
      %49 = dma.hbm_to_vmem [thread:$0]  %s45, 16, %s47, [#allocation7]
    $region21: #{tpu_custom_call.1} parent=1 // pred_fallthru
      _
    // Predicated region
    $region22: #{tpu_custom_call.1} parent=1 // pred_check
      _
    $region23: #{tpu_custom_call.1} parent=1 // pred_check_branch
      %51 = sbr.rel (0) target = $region25
    $region24: #{tpu_custom_call.1} parent=1 // pred_region
      _
    $region25: #{tpu_custom_call.1} parent=1 // pred_fallthru
      _
    // Predicated region
    $region26: #{tpu_custom_call.1} parent=1 // pred_check
      _
    $region27: #{tpu_custom_call.1} parent=1 // pred_check_branch
      %53 = sbr.rel (0) target = $region29
    $region28: #{tpu_custom_call.1} parent=1 // pred_region
      %55 = vsyncadd [#allocation7], 0
      %s56 = sshll.u32 %s6, 4
      %s57 = int_to_ptr.hbm [resolvable:$true] %s56
      %s58 = sshll.u32 [#allocation8], 4
      %s59 = int_to_ptr.vmem [resolvable:$true] %s58
      %64 = dma.hbm_to_vmem [thread:$0]  %s57, 512, %s59, [#allocation7], 64, 64, 4
    $region29: #{tpu_custom_call.1} parent=1 // pred_fallthru
      _
    // Predicated region
    $region30: #{tpu_custom_call.1} parent=1 // pred_check
      _
    $region31: #{tpu_custom_call.1} parent=1 // pred_check_branch
      %66 = sbr.rel (0) target = $region33
    $region32: #{tpu_custom_call.1} parent=1 // pred_region
      _
    $region33: #{tpu_custom_call.1} parent=1 // pred_fallthru
      _
    // Predicated region
    $region34: #{tpu_custom_call.1} parent=1 // pred_check
      _
    $region35: #{tpu_custom_call.1} parent=1 // pred_check_branch
      %68 = sbr.rel (0) target = $region37
    $region36: #{tpu_custom_call.1} parent=1 // pred_region
      %70 = vsyncadd [#allocation10], 0
      %s71 = sshll.u32 %s8, 4
      %s72 = int_to_ptr.hbm [resolvable:$true] %s71
      %s73 = sshll.u32 [#allocation9], 4
      %s74 = int_to_ptr.vmem [resolvable:$true] %s73
      %79 = dma.hbm_to_vmem [thread:$0]  %s72, 256, %s74, [#allocation10], 64, 64, 4
    $region37: #{tpu_custom_call.1} parent=1 // pred_fallthru
      _
    // Predicated region
    $region38: #{tpu_custom_call.1} parent=1 // pred_check
      _
    $region39: #{tpu_custom_call.1} parent=1 // pred_check_branch
      %81 = sbr.rel (0) target = $region41
    $region40: #{tpu_custom_call.1} parent=1 // pred_region
      _
    $region41: #{tpu_custom_call.1} parent=1 // pred_fallthru
      _
    // Predicated region
    $region42: #{tpu_custom_call.1} parent=1 // pred_check
      _
    $region43: #{tpu_custom_call.1} parent=1 // pred_check_branch
      %83 = sbr.rel (0) target = $region45
    $region44: #{tpu_custom_call.1} parent=1 // pred_region
      _
    $region45: #{tpu_custom_call.1} parent=1 // pred_fallthru
      _
    // Predicated region
    $region46: #{tpu_custom_call.1} parent=1 // pred_check
      _
    $region47: #{tpu_custom_call.1} parent=1 // pred_check_branch
      %85 = sbr.rel (0) target = $region49
    $region48: #{tpu_custom_call.1} parent=1 // pred_region
      _
    $region49: #{tpu_custom_call.1} parent=1 // pred_fallthru
      _
    // Predicated region
    $region50: #{tpu_custom_call.1} parent=1 // pred_check
      _
    $region51: #{tpu_custom_call.1} parent=1 // pred_check_branch
      %87 = sbr.rel (0) target = $region53
    $region52: #{tpu_custom_call.1} parent=1 // pred_region
      _
    $region53: #{tpu_custom_call.1} parent=1 // pred_fallthru
      _
    // Predicated region
    $region54: #{tpu_custom_call.1} parent=1 // pred_check
      _
    $region55: #{tpu_custom_call.1} parent=1 // pred_check_branch
      %89 = sbr.rel (0) target = $region57
    $region56: #{tpu_custom_call.1} parent=1 // pred_region
      _
    $region57: #{tpu_custom_call.1} parent=1 // pred_fallthru
      _
    // Predicated region
    $region58: #{tpu_custom_call.1} parent=1 // pred_check
      _
    $region59: #{tpu_custom_call.1} parent=1 // pred_check_branch
      %91 = sbr.rel (0) target = $region61
    $region60: #{tpu_custom_call.1} parent=1 // pred_region
      %93 = dma.done [#allocation5], 16
    $region61: #{tpu_custom_call.1} parent=1 // pred_fallthru
      _
    // Predicated region
    $region62: #{tpu_custom_call.1} parent=1 // pred_check
      _
    $region63: #{tpu_custom_call.1} parent=1 // pred_check_branch
      %95 = sbr.rel (0) target = $region65
    $region64: #{tpu_custom_call.1} parent=1 // pred_region
      %97 = dma.done [#allocation7], 16
    $region65: #{tpu_custom_call.1} parent=1 // pred_fallthru
      _
    // Predicated region
    $region66: #{tpu_custom_call.1} parent=1 // pred_check
      _
    $region67: #{tpu_custom_call.1} parent=1 // pred_check_branch
      %99 = sbr.rel (0) target = $region69
    $region68: #{tpu_custom_call.1} parent=1 // pred_region
      %101 = dma.done [#allocation7], 512
    $region69: #{tpu_custom_call.1} parent=1 // pred_fallthru
      _
    // Predicated region
    $region70: #{tpu_custom_call.1} parent=1 // pred_check
      _
    $region71: #{tpu_custom_call.1} parent=1 // pred_check_branch
      %103 = sbr.rel (0) target = $region73
    $region72: #{tpu_custom_call.1} parent=1 // pred_region
      %105 = dma.done [#allocation10], 256
    $region73: #{tpu_custom_call.1} parent=1 // pred_fallthru
      _
    %v107 = vld [vmem:[%s0] sm:$0xf]
    %v108 = vld [vmem:[%s0 + $0x4] sm:$0xf]
    %v109 = vld [vmem:[%s0 + $0x8] sm:$0xf]
    %v110 = vld [vmem:[%s0 + $0xc] sm:$0xf]
    %v111 = vld [vmem:[%s0 + $0x10] sm:$0xf]
    %v112 = vld [vmem:[%s0 + $0x14] sm:$0xf]
    %v113 = vld [vmem:[%s0 + $0x18] sm:$0xf]
    %v114 = vld [vmem:[%s0 + $0x1c] sm:$0xf]
    %v115 = vld [vmem:[%s1] sm:$0xf]
    %v116 = vld [vmem:[%s1 + $0x4] sm:$0xf]
    %v117 = vld [vmem:[%s1 + $0x8] sm:$0xf]
    %v118 = vld [vmem:[%s1 + $0xc] sm:$0x3]
    %v119 = vld [vmem:[%s2] sm:$0x1]
    %v121 = vperm.slane %v119, 0
    %v131 = vunpack.c.l.b16 %v107
    %v132 = vunpack.c.l.b16 %v108
    %v133 = vunpack.c.l.b16 %v109
    %v134 = vunpack.c.l.b16 %v110
    %v135 = vunpack.c.l.b16 %v111
    %v136 = vunpack.c.l.b16 %v112
    %v137 = vunpack.c.l.b16 %v113
    %v138 = vunpack.c.l.b16 %v114
    %v139 = vpack.c.b16 %v132, %v131
    %v140 = vpack.c.b16 %v134, %v133
    %v141 = vpack.c.b16 %v136, %v135
    %v142 = vpack.c.b16 %v138, %v137
    %v147 = vunpack.c.l.b16 %v115
    %v148 = vunpack.c.l.b16 %v116
    %v149 = vunpack.c.l.b16 %v117
    %v150 = vunpack.c.l.b16 %v118
    %v151 = vpack.c.b16 %v148, %v147
    %v152 = vpack.c.b16 %v150, %v149
    %vm154 = vcmask 228352
    %v156 = vsel %vm154, %v139, 0
    %v159 = vsel %vm154, %v140, 0
    %v162 = vsel %vm154, %v141, 0
    %v165 = vsel %vm154, %v142, 0
    %vm167 = vcmask 1045504
    %v169 = vsel %vm167, %v152, 0
    %171 = vmatpush.bf16.msra.mxu0 0
    %172 = vmatpush.bf16.msra.mxu0 0
    %173 = vmatpush.bf16.msra.mxu0 0
    %174 = vmatpush.bf16.msra.mxu0 0
    %175 = vmatpush.bf16.msra.mxu0 0
    %176 = vmatpush.bf16.msra.mxu0 0
    %177 = vmatpush.bf16.msra.mxu0 %v169
    %178 = vmatpush.bf16.msra.mxu0 %v151
    %179 = vmatmul.bf16.gmra.mxu0 %v156
    %v180 = vpop.f32.mrf.mxu0
    %v181 = vadd.f32 %v121, %v180
    %v182 = vpop.f32.mrf.mxu0
    %v183 = vadd.f32 %v121, %v182
    %184 = vmatmul.bf16.gmra.mxu0 %v159
    %v185 = vpop.f32.mrf.mxu0
    %v186 = vadd.f32 %v121, %v185
    %v187 = vpop.f32.mrf.mxu0
    %v188 = vadd.f32 %v121, %v187
    %189 = vmatmul.bf16.gmra.mxu0 %v162
    %v190 = vpop.f32.mrf.mxu0
    %v191 = vadd.f32 %v121, %v190
    %v192 = vpop.f32.mrf.mxu0
    %v193 = vadd.f32 %v121, %v192
    %194 = vmatmul.bf16.gmra.mxu0 %v165
    %v195 = vpop.f32.mrf.mxu0
    %v196 = vadd.f32 %v121, %v195
    %v197 = vpop.f32.mrf.mxu0
    %v198 = vadd.f32 %v121, %v197
    %199 = vdwg.mxu0
    %v200 = vld [vmem:[#allocation4] sm:$0x1]
    %v201 = vld [vmem:[#allocation6] sm:$0x1]
    %vm202 = vcmask 130048
    %v203 = vsel %vm202, %v181, 0.0
    %204 = vadd.xlane.f32.xlu0 %v203
    %v205 = vpop.xlane.xlu0 %204
    %v206 = vsel %vm202, %v183, 0.0
    %207 = vadd.xlane.f32.xlu0 %v206
    %v208 = vpop.xlane.xlu0 %207
    %v209 = vsel %vm202, %v186, 0.0
    %210 = vadd.xlane.f32.xlu0 %v209
    %v211 = vpop.xlane.xlu0 %210
    %v212 = vsel %vm202, %v188, 0.0
    %213 = vadd.xlane.f32.xlu0 %v212
    %v214 = vpop.xlane.xlu0 %213
    %v215 = vsel %vm202, %v191, 0.0
    %216 = vadd.xlane.f32.xlu0 %v215
    %v217 = vpop.xlane.xlu0 %216
    %v218 = vsel %vm202, %v193, 0.0
    %219 = vadd.xlane.f32.xlu0 %v218
    %v220 = vpop.xlane.xlu0 %219
    %v221 = vsel %vm202, %v196, 0.0
    %222 = vadd.xlane.f32.xlu0 %v221
    %v223 = vpop.xlane.xlu0 %222
    %v224 = vsel %vm202, %v198, 0.0
    %225 = vadd.xlane.f32.xlu0 %v224
    %v226 = vpop.xlane.xlu0 %225
    %v227 = vrcp.pop 16.0
    %v228 = vmul.f32 16.0, %v227
    %v229 = vsub.f32 1.0, %v228
    %v230 = vmul.f32 %v227, %v229
    %v231 = vadd.f32 %v227, %v230
    %vm232 = vweird.f32 %v227
    %v233 = vsel %vm232, %v227, %v231
    %v234 = vmul.f32 %v205, %v233
    %v235 = vmul.f32 %v208, %v233
    %v236 = vmul.f32 %v211, %v233
    %v237 = vmul.f32 %v214, %v233
    %v238 = vmul.f32 %v217, %v233
    %v239 = vmul.f32 %v220, %v233
    %v240 = vmul.f32 %v223, %v233
    %v241 = vmul.f32 %v226, %v233
    %v242 = vsub.f32 %v181, %v234
    %v243 = vsub.f32 %v183, %v235
    %v244 = vsub.f32 %v186, %v236
    %v245 = vsub.f32 %v188, %v237
    %v246 = vsub.f32 %v191, %v238
    %v247 = vsub.f32 %v193, %v239
    %v248 = vsub.f32 %v196, %v240
    %v249 = vsub.f32 %v198, %v241
    %v250 = vmul.f32 %v242, %v242
    %v251 = vmul.f32 %v243, %v243
    %v252 = vmul.f32 %v244, %v244
    %v253 = vmul.f32 %v245, %v245
    %v254 = vmul.f32 %v246, %v246
    %v255 = vmul.f32 %v247, %v247
    %v256 = vmul.f32 %v248, %v248
    %v257 = vmul.f32 %v249, %v249
    %v258 = vsel %vm202, %v250, 0.0
    %259 = vadd.xlane.f32.xlu0 %v258
    %v260 = vpop.xlane.xlu0 %259
    %v261 = vsel %vm202, %v251, 0.0
    %262 = vadd.xlane.f32.xlu0 %v261
    %v263 = vpop.xlane.xlu0 %262
    %v264 = vsel %vm202, %v252, 0.0
    %265 = vadd.xlane.f32.xlu0 %v264
    %v266 = vpop.xlane.xlu0 %265
    %v267 = vsel %vm202, %v253, 0.0
    %268 = vadd.xlane.f32.xlu0 %v267
    %v269 = vpop.xlane.xlu0 %268
    %v270 = vsel %vm202, %v254, 0.0
    %271 = vadd.xlane.f32.xlu0 %v270
    %v272 = vpop.xlane.xlu0 %271
    %v273 = vsel %vm202, %v255, 0.0
    %274 = vadd.xlane.f32.xlu0 %v273
    %v275 = vpop.xlane.xlu0 %274
    %v276 = vsel %vm202, %v256, 0.0
    %277 = vadd.xlane.f32.xlu0 %v276
    %v278 = vpop.xlane.xlu0 %277
    %v279 = vsel %vm202, %v257, 0.0
    %280 = vadd.xlane.f32.xlu0 %v279
    %v281 = vpop.xlane.xlu0 %280
    %v282 = vmul.f32 %v260, %v233
    %v283 = vmul.f32 %v263, %v233
    %v284 = vmul.f32 %v266, %v233
    %v285 = vmul.f32 %v269, %v233
    %v286 = vmul.f32 %v272, %v233
    %v287 = vmul.f32 %v275, %v233
    %v288 = vmul.f32 %v278, %v233
    %v289 = vmul.f32 %v281, %v233
    %v290 = vadd.f32 %v282, 1e-05
    %v291 = vadd.f32 %v283, 1e-05
    %v292 = vadd.f32 %v284, 1e-05
    %v293 = vadd.f32 %v285, 1e-05
    %v294 = vadd.f32 %v286, 1e-05
    %v295 = vadd.f32 %v287, 1e-05
    %v296 = vadd.f32 %v288, 1e-05
    %v297 = vadd.f32 %v289, 1e-05
    %v298 = vrsqrt.pop %v290
    %v299 = vmul.f32 %v298, %v290
    %v300 = vmul.f32 %v299, %v298
    %v301 = vmul.f32 0.5, %v300
    %v302 = vsub.f32 1.5, %v301
    %v303 = vmul.f32 %v298, %v302
    %vm304 = vweird.f32 %v290
    %vm305 = vweird.f32 %v298
    %vm306 = vmor %vm304, %vm305
    %v307 = vsel %vm306, %v298, %v303
    %v308 = vrsqrt.pop %v291
    %v309 = vmul.f32 %v308, %v291
    %v310 = vmul.f32 %v309, %v308
    %v311 = vmul.f32 0.5, %v310
    %v312 = vsub.f32 1.5, %v311
    %v313 = vmul.f32 %v308, %v312
    %vm314 = vweird.f32 %v291
    %vm315 = vweird.f32 %v308
    %vm316 = vmor %vm314, %vm315
    %v317 = vsel %vm316, %v308, %v313
    %v318 = vrsqrt.pop %v292
    %v319 = vmul.f32 %v318, %v292
    %v320 = vmul.f32 %v319, %v318
    %v321 = vmul.f32 0.5, %v320
    %v322 = vsub.f32 1.5, %v321
    %v323 = vmul.f32 %v318, %v322
    %vm324 = vweird.f32 %v292
    %vm325 = vweird.f32 %v318
    %vm326 = vmor %vm324, %vm325
    %v327 = vsel %vm326, %v318, %v323
    %v328 = vrsqrt.pop %v293
    %v329 = vmul.f32 %v328, %v293
    %v330 = vmul.f32 %v329, %v328
    %v331 = vmul.f32 0.5, %v330
    %v332 = vsub.f32 1.5, %v331
    %v333 = vmul.f32 %v328, %v332
    %vm334 = vweird.f32 %v293
    %vm335 = vweird.f32 %v328
    %vm336 = vmor %vm334, %vm335
    %v337 = vsel %vm336, %v328, %v333
    %v338 = vrsqrt.pop %v294
    %v339 = vmul.f32 %v338, %v294
    %v340 = vmul.f32 %v339, %v338
    %v341 = vmul.f32 0.5, %v340
    %v342 = vsub.f32 1.5, %v341
    %v343 = vmul.f32 %v338, %v342
    %vm344 = vweird.f32 %v294
    %vm345 = vweird.f32 %v338
    %vm346 = vmor %vm344, %vm345
    %v347 = vsel %vm346, %v338, %v343
    %v348 = vrsqrt.pop %v295
    %v349 = vmul.f32 %v348, %v295
    %v350 = vmul.f32 %v349, %v348
    %v351 = vmul.f32 0.5, %v350
    %v352 = vsub.f32 1.5, %v351
    %v353 = vmul.f32 %v348, %v352
    %vm354 = vweird.f32 %v295
    %vm355 = vweird.f32 %v348
    %vm356 = vmor %vm354, %vm355
    %v357 = vsel %vm356, %v348, %v353
    %v358 = vrsqrt.pop %v296
    %v359 = vmul.f32 %v358, %v296
    %v360 = vmul.f32 %v359, %v358
    %v361 = vmul.f32 0.5, %v360
    %v362 = vsub.f32 1.5, %v361
    %v363 = vmul.f32 %v358, %v362
    %vm364 = vweird.f32 %v296
    %vm365 = vweird.f32 %v358
    %vm366 = vmor %vm364, %vm365
    %v367 = vsel %vm366, %v358, %v363
    %v368 = vrsqrt.pop %v297
    %v369 = vmul.f32 %v368, %v297
    %v370 = vmul.f32 %v369, %v368
    %v371 = vmul.f32 0.5, %v370
    %v372 = vsub.f32 1.5, %v371
    %v373 = vmul.f32 %v368, %v372
    %vm374 = vweird.f32 %v297
    %vm375 = vweird.f32 %v368
    %vm376 = vmor %vm374, %vm375
    %v377 = vsel %vm376, %v368, %v373
    %v378 = vmul.f32 %v242, %v307
    %v379 = vmul.f32 %v243, %v317
    %v380 = vmul.f32 %v244, %v327
    %v381 = vmul.f32 %v245, %v337
    %v382 = vmul.f32 %v246, %v347
    %v383 = vmul.f32 %v247, %v357
    %v384 = vmul.f32 %v248, %v367
    %v385 = vmul.f32 %v249, %v377
    %v387 = vperm.slane %v200, 0
    %v389 = vmul.f32 %v378, %v387
    %v390 = vmul.f32 %v379, %v387
    %v391 = vmul.f32 %v380, %v387
    %v392 = vmul.f32 %v381, %v387
    %v393 = vmul.f32 %v382, %v387
    %v394 = vmul.f32 %v383, %v387
    %v395 = vmul.f32 %v384, %v387
    %v396 = vmul.f32 %v385, %v387
    %v398 = vperm.slane %v201, 0
    %v400 = vadd.f32 %v389, %v398
    %v401 = vadd.f32 %v390, %v398
    %v402 = vadd.f32 %v391, %v398
    %v403 = vadd.f32 %v392, %v398
    %v404 = vadd.f32 %v393, %v398
    %v405 = vadd.f32 %v394, %v398
    %v406 = vadd.f32 %v395, %v398
    %v407 = vadd.f32 %v396, %v398
    %408 = vst.msk [vmem:[#allocation2] sm:$0xff] %vm202, %v400
    %409 = vst.msk [vmem:[#allocation2 + $0x8] sm:$0xff] %vm202, %v401
    %410 = vst.msk [vmem:[#allocation2 + $0x10] sm:$0xff] %vm202, %v402
    %411 = vst.msk [vmem:[#allocation2 + $0x18] sm:$0xff] %vm202, %v403
    %412 = vst.msk [vmem:[#allocation2 + $0x20] sm:$0xff] %vm202, %v404
    %413 = vst.msk [vmem:[#allocation2 + $0x28] sm:$0xff] %vm202, %v405
    %414 = vst.msk [vmem:[#allocation2 + $0x30] sm:$0xff] %vm202, %v406
    %415 = vst.msk [vmem:[#allocation2 + $0x38] sm:$0xff] %vm202, %v407
    %v416 = vld [vmem:[#allocation4] sm:$0x1]
    %v417 = vld [vmem:[#allocation6] sm:$0x1]
    %426 = vrot.lane.b32.xlu0 %v181, 112
    %v427 = vpop.permute.xlu0 %426
    %428 = vrot.lane.b32.xlu0 %v183, 112
    %v429 = vpop.permute.xlu0 %428
    %430 = vrot.lane.b32.xlu0 %v186, 112
    %v431 = vpop.permute.xlu0 %430
    %432 = vrot.lane.b32.xlu0 %v188, 112
    %v433 = vpop.permute.xlu0 %432
    %434 = vrot.lane.b32.xlu0 %v191, 112
    %v435 = vpop.permute.xlu0 %434
    %436 = vrot.lane.b32.xlu0 %v193, 112
    %v437 = vpop.permute.xlu0 %436
    %438 = vrot.lane.b32.xlu0 %v196, 112
    %v439 = vpop.permute.xlu0 %438
    %440 = vrot.lane.b32.xlu0 %v198, 112
    %v441 = vpop.permute.xlu0 %440
    %v450 = vsel %vm202, %v427, 0.0
    %451 = vadd.xlane.f32.xlu0 %v450
    %v452 = vpop.xlane.xlu0 %451
    %v453 = vsel %vm202, %v429, 0.0
    %454 = vadd.xlane.f32.xlu0 %v453
    %v455 = vpop.xlane.xlu0 %454
    %v456 = vsel %vm202, %v431, 0.0
    %457 = vadd.xlane.f32.xlu0 %v456
    %v458 = vpop.xlane.xlu0 %457
    %v459 = vsel %vm202, %v433, 0.0
    %460 = vadd.xlane.f32.xlu0 %v459
    %v461 = vpop.xlane.xlu0 %460
    %v462 = vsel %vm202, %v435, 0.0
    %463 = vadd.xlane.f32.xlu0 %v462
    %v464 = vpop.xlane.xlu0 %463
    %v465 = vsel %vm202, %v437, 0.0
    %466 = vadd.xlane.f32.xlu0 %v465
    %v467 = vpop.xlane.xlu0 %466
    %v468 = vsel %vm202, %v439, 0.0
    %469 = vadd.xlane.f32.xlu0 %v468
    %v470 = vpop.xlane.xlu0 %469
    %v471 = vsel %vm202, %v441, 0.0
    %472 = vadd.xlane.f32.xlu0 %v471
    %v473 = vpop.xlane.xlu0 %472
    %v474 = vmul.f32 %v452, %v233
    %v475 = vmul.f32 %v455, %v233
    %v476 = vmul.f32 %v458, %v233
    %v477 = vmul.f32 %v461, %v233
    %v478 = vmul.f32 %v464, %v233
    %v479 = vmul.f32 %v467, %v233
    %v480 = vmul.f32 %v470, %v233
    %v481 = vmul.f32 %v473, %v233
    %v482 = vsub.f32 %v181, %v474
    %v483 = vsub.f32 %v183, %v475
    %v484 = vsub.f32 %v186, %v476
    %v485 = vsub.f32 %v188, %v477
    %v486 = vsub.f32 %v191, %v478
    %v487 = vsub.f32 %v193, %v479
    %v488 = vsub.f32 %v196, %v480
    %v489 = vsub.f32 %v198, %v481
    %v490 = vmul.f32 %v482, %v482
    %v491 = vmul.f32 %v483, %v483
    %v492 = vmul.f32 %v484, %v484
    %v493 = vmul.f32 %v485, %v485
    %v494 = vmul.f32 %v486, %v486
    %v495 = vmul.f32 %v487, %v487
    %v496 = vmul.f32 %v488, %v488
    %v497 = vmul.f32 %v489, %v489
    %506 = vrot.lane.b32.xlu0 %v490, 112
    %v507 = vpop.permute.xlu0 %506
    %508 = vrot.lane.b32.xlu0 %v491, 112
    %v509 = vpop.permute.xlu0 %508
    %510 = vrot.lane.b32.xlu0 %v492, 112
    %v511 = vpop.permute.xlu0 %510
    %512 = vrot.lane.b32.xlu0 %v493, 112
    %v513 = vpop.permute.xlu0 %512
    %514 = vrot.lane.b32.xlu0 %v494, 112
    %v515 = vpop.permute.xlu0 %514
    %516 = vrot.lane.b32.xlu0 %v495, 112
    %v517 = vpop.permute.xlu0 %516
    %518 = vrot.lane.b32.xlu0 %v496, 112
    %v519 = vpop.permute.xlu0 %518
    %520 = vrot.lane.b32.xlu0 %v497, 112
    %v521 = vpop.permute.xlu0 %520
    %v530 = vsel %vm202, %v507, 0.0
    %531 = vadd.xlane.f32.xlu0 %v530
    %v532 = vpop.xlane.xlu0 %531
    %v533 = vsel %vm202, %v509, 0.0
    %534 = vadd.xlane.f32.xlu0 %v533
    %v535 = vpop.xlane.xlu0 %534
    %v536 = vsel %vm202, %v511, 0.0
    %537 = vadd.xlane.f32.xlu0 %v536
    %v538 = vpop.xlane.xlu0 %537
    %v539 = vsel %vm202, %v513, 0.0
    %540 = vadd.xlane.f32.xlu0 %v539
    %v541 = vpop.xlane.xlu0 %540
    %v542 = vsel %vm202, %v515, 0.0
    %543 = vadd.xlane.f32.xlu0 %v542
    %v544 = vpop.xlane.xlu0 %543
    %v545 = vsel %vm202, %v517, 0.0
    %546 = vadd.xlane.f32.xlu0 %v545
    %v547 = vpop.xlane.xlu0 %546
    %v548 = vsel %vm202, %v519, 0.0
    %549 = vadd.xlane.f32.xlu0 %v548
    %v550 = vpop.xlane.xlu0 %549
    %v551 = vsel %vm202, %v521, 0.0
    %552 = vadd.xlane.f32.xlu0 %v551
    %v553 = vpop.xlane.xlu0 %552
    %v554 = vmul.f32 %v532, %v233
    %v555 = vmul.f32 %v535, %v233
    %v556 = vmul.f32 %v538, %v233
    %v557 = vmul.f32 %v541, %v233
    %v558 = vmul.f32 %v544, %v233
    %v559 = vmul.f32 %v547, %v233
    %v560 = vmul.f32 %v550, %v233
    %v561 = vmul.f32 %v553, %v233
    %v562 = vadd.f32 %v554, 1e-05
    %v563 = vadd.f32 %v555, 1e-05
    %v564 = vadd.f32 %v556, 1e-05
    %v565 = vadd.f32 %v557, 1e-05
    %v566 = vadd.f32 %v558, 1e-05
    %v567 = vadd.f32 %v559, 1e-05
    %v568 = vadd.f32 %v560, 1e-05
    %v569 = vadd.f32 %v561, 1e-05
    %v570 = vrsqrt.pop %v562
    %v571 = vmul.f32 %v570, %v562
    %v572 = vmul.f32 %v571, %v570
    %v573 = vmul.f32 0.5, %v572
    %v574 = vsub.f32 1.5, %v573
    %v575 = vmul.f32 %v570, %v574
    %vm576 = vweird.f32 %v562
    %vm577 = vweird.f32 %v570
    %vm578 = vmor %vm576, %vm577
    %v579 = vsel %vm578, %v570, %v575
    %v580 = vrsqrt.pop %v563
    %v581 = vmul.f32 %v580, %v563
    %v582 = vmul.f32 %v581, %v580
    %v583 = vmul.f32 0.5, %v582
    %v584 = vsub.f32 1.5, %v583
    %v585 = vmul.f32 %v580, %v584
    %vm586 = vweird.f32 %v563
    %vm587 = vweird.f32 %v580
    %vm588 = vmor %vm586, %vm587
    %v589 = vsel %vm588, %v580, %v585
    %v590 = vrsqrt.pop %v564
    %v591 = vmul.f32 %v590, %v564
    %v592 = vmul.f32 %v591, %v590
    %v593 = vmul.f32 0.5, %v592
    %v594 = vsub.f32 1.5, %v593
    %v595 = vmul.f32 %v590, %v594
    %vm596 = vweird.f32 %v564
    %vm597 = vweird.f32 %v590
    %vm598 = vmor %vm596, %vm597
    %v599 = vsel %vm598, %v590, %v595
    %v600 = vrsqrt.pop %v565
    %v601 = vmul.f32 %v600, %v565
    %v602 = vmul.f32 %v601, %v600
    %v603 = vmul.f32 0.5, %v602
    %v604 = vsub.f32 1.5, %v603
    %v605 = vmul.f32 %v600, %v604
    %vm606 = vweird.f32 %v565
    %vm607 = vweird.f32 %v600
    %vm608 = vmor %vm606, %vm607
    %v609 = vsel %vm608, %v600, %v605
    %v610 = vrsqrt.pop %v566
    %v611 = vmul.f32 %v610, %v566
    %v612 = vmul.f32 %v611, %v610
    %v613 = vmul.f32 0.5, %v612
    %v614 = vsub.f32 1.5, %v613
    %v615 = vmul.f32 %v610, %v614
    %vm616 = vweird.f32 %v566
    %vm617 = vweird.f32 %v610
    %vm618 = vmor %vm616, %vm617
    %v619 = vsel %vm618, %v610, %v615
    %v620 = vrsqrt.pop %v567
    %v621 = vmul.f32 %v620, %v567
    %v622 = vmul.f32 %v621, %v620
    %v623 = vmul.f32 0.5, %v622
    %v624 = vsub.f32 1.5, %v623
    %v625 = vmul.f32 %v620, %v624
    %vm626 = vweird.f32 %v567
    %vm627 = vweird.f32 %v620
    %vm628 = vmor %vm626, %vm627
    %v629 = vsel %vm628, %v620, %v625
    %v630 = vrsqrt.pop %v568
    %v631 = vmul.f32 %v630, %v568
    %v632 = vmul.f32 %v631, %v630
    %v633 = vmul.f32 0.5, %v632
    %v634 = vsub.f32 1.5, %v633
    %v635 = vmul.f32 %v630, %v634
    %vm636 = vweird.f32 %v568
    %vm637 = vweird.f32 %v630
    %vm638 = vmor %vm636, %vm637
    %v639 = vsel %vm638, %v630, %v635
    %v640 = vrsqrt.pop %v569
    %v641 = vmul.f32 %v640, %v569
    %v642 = vmul.f32 %v641, %v640
    %v643 = vmul.f32 0.5, %v642
    %v644 = vsub.f32 1.5, %v643
    %v645 = vmul.f32 %v640, %v644
    %vm646 = vweird.f32 %v569
    %vm647 = vweird.f32 %v640
    %vm648 = vmor %vm646, %vm647
    %v649 = vsel %vm648, %v640, %v645
    %v650 = vmul.f32 %v482, %v579
    %v651 = vmul.f32 %v483, %v589
    %v652 = vmul.f32 %v484, %v599
    %v653 = vmul.f32 %v485, %v609
    %v654 = vmul.f32 %v486, %v619
    %v655 = vmul.f32 %v487, %v629
    %v656 = vmul.f32 %v488, %v639
    %v657 = vmul.f32 %v489, %v649
    %v659 = vperm.slane %v416, 0
    %v661 = vmul.f32 %v650, %v659
    %v662 = vmul.f32 %v651, %v659
    %v663 = vmul.f32 %v652, %v659
    %v664 = vmul.f32 %v653, %v659
    %v665 = vmul.f32 %v654, %v659
    %v666 = vmul.f32 %v655, %v659
    %v667 = vmul.f32 %v656, %v659
    %v668 = vmul.f32 %v657, %v659
    %v670 = vperm.slane %v417, 0
    %v672 = vadd.f32 %v661, %v670
    %v673 = vadd.f32 %v662, %v670
    %v674 = vadd.f32 %v663, %v670
    %v675 = vadd.f32 %v664, %v670
    %v676 = vadd.f32 %v665, %v670
    %v677 = vadd.f32 %v666, %v670
    %v678 = vadd.f32 %v667, %v670
    %v679 = vadd.f32 %v668, %v670
    %vm680 = vcmask 261248
    %681 = vst.msk [vmem:[#allocation2] sm:$0xff] %vm680, %v672
    %682 = vst.msk [vmem:[#allocation2 + $0x8] sm:$0xff] %vm680, %v673
    %683 = vst.msk [vmem:[#allocation2 + $0x10] sm:$0xff] %vm680, %v674
    %684 = vst.msk [vmem:[#allocation2 + $0x18] sm:$0xff] %vm680, %v675
    %685 = vst.msk [vmem:[#allocation2 + $0x20] sm:$0xff] %vm680, %v676
    %686 = vst.msk [vmem:[#allocation2 + $0x28] sm:$0xff] %vm680, %v677
    %687 = vst.msk [vmem:[#allocation2 + $0x30] sm:$0xff] %vm680, %v678
    %688 = vst.msk [vmem:[#allocation2 + $0x38] sm:$0xff] %vm680, %v679
    %v689 = vld [vmem:[#allocation2] sm:$0xff]
    %v690 = vld [vmem:[#allocation2 + $0x8] sm:$0xff]
    %v691 = vld [vmem:[#allocation2 + $0x10] sm:$0xff]
    %v692 = vld [vmem:[#allocation2 + $0x18] sm:$0xff]
    %v693 = vld [vmem:[#allocation2 + $0x20] sm:$0xff]
    %v694 = vld [vmem:[#allocation2 + $0x28] sm:$0xff]
    %v695 = vld [vmem:[#allocation2 + $0x30] sm:$0xff]
    %v696 = vld [vmem:[#allocation2 + $0x38] sm:$0xff]
    %v697 = vpack.c.bf16 %v690, %v689
    %v698 = vpack.c.bf16 %v692, %v691
    %v699 = vpack.c.bf16 %v694, %v693
    %v700 = vpack.c.bf16 %v696, %v695
    %v701 = vld [vmem:[%s5] sm:$0xf]
    %v702 = vld [vmem:[%s5 + $0x4] sm:$0xf]
    %v703 = vld [vmem:[%s5 + $0x8] sm:$0xf]
    %v704 = vld [vmem:[%s5 + $0xc] sm:$0xf]
    %v705 = vld [vmem:[%s7] sm:$0x1]
    %v707 = vperm.slane %v705, 0
    %v713 = vunpack.c.l.b16 %v701
    %v714 = vunpack.c.l.b16 %v702
    %v715 = vunpack.c.l.b16 %v703
    %v716 = vunpack.c.l.b16 %v704
    %v717 = vpack.c.b16 %v714, %v713
    %v718 = vpack.c.b16 %v716, %v715
    %vm721 = vcmask 261120
    %v723 = vsel %vm721, %v697, 0
    %v726 = vsel %vm721, %v698, 0
    %v729 = vsel %vm721, %v699, 0
    %v732 = vsel %vm721, %v700, 0
    %734 = vmatpush.bf16.msra.mxu0 0
    %735 = vmatpush.bf16.msra.mxu0 0
    %736 = vmatpush.bf16.msra.mxu0 0
    %737 = vmatpush.bf16.msra.mxu0 0
    %738 = vmatpush.bf16.msra.mxu0 0
    %739 = vmatpush.bf16.msra.mxu0 0
    %740 = vmatpush.bf16.msra.mxu0 %v718
    %741 = vmatpush.bf16.msra.mxu0 %v717
    %742 = vmatmul.bf16.gmra.mxu0 %v723
    %v743 = vpop.f32.mrf.mxu0
    %v744 = vadd.f32 %v707, %v743
    %v745 = vpop.f32.mrf.mxu0
    %v746 = vadd.f32 %v707, %v745
    %747 = vmatmul.bf16.gmra.mxu0 %v726
    %v748 = vpop.f32.mrf.mxu0
    %v749 = vadd.f32 %v707, %v748
    %v750 = vpop.f32.mrf.mxu0
    %v751 = vadd.f32 %v707, %v750
    %752 = vmatmul.bf16.gmra.mxu0 %v729
    %v753 = vpop.f32.mrf.mxu0
    %v754 = vadd.f32 %v707, %v753
    %v755 = vpop.f32.mrf.mxu0
    %v756 = vadd.f32 %v707, %v755
    %757 = vmatmul.bf16.gmra.mxu0 %v732
    %v758 = vpop.f32.mrf.mxu0
    %v759 = vadd.f32 %v707, %v758
    %v760 = vpop.f32.mrf.mxu0
    %v761 = vadd.f32 %v707, %v760
    %762 = vdwg.mxu0
    %763 = vst [vmem:[#allocation3] sm:$0xff] %v744
    %764 = vst [vmem:[#allocation3 + $0x8] sm:$0xff] %v746
    %765 = vst [vmem:[#allocation3 + $0x10] sm:$0xff] %v749
    %766 = vst [vmem:[#allocation3 + $0x18] sm:$0xff] %v751
    %767 = vst [vmem:[#allocation3 + $0x20] sm:$0xff] %v754
    %768 = vst [vmem:[#allocation3 + $0x28] sm:$0xff] %v756
    %769 = vst [vmem:[#allocation3 + $0x30] sm:$0xff] %v759
    %770 = vst [vmem:[#allocation3 + $0x38] sm:$0xff] %v761
    %v771 = vld [vmem:[#allocation8] sm:$0xf]
    %v772 = vld [vmem:[#allocation8 + $0x4] sm:$0xf]
    %v773 = vld [vmem:[#allocation8 + $0x8] sm:$0xf]
    %v774 = vld [vmem:[#allocation8 + $0xc] sm:$0xf]
    %v775 = vld [vmem:[#allocation3] sm:$0xff]
    %v780 = vunpack.c.l.b16 %v771
    %v781 = vunpack.c.l.b16 %v772
    %v782 = vunpack.c.l.b16 %v773
    %v783 = vunpack.c.l.b16 %v774
    %v784 = vpack.c.b16 %v781, %v780
    %v785 = vpack.c.b16 %v783, %v782
    %v789 = vsel %vm721, 0, 0
    %791 = vmatpush.bf16.msra.mxu0 0
    %792 = vmatpush.bf16.msra.mxu0 0
    %793 = vmatpush.bf16.msra.mxu0 0
    %794 = vmatpush.bf16.msra.mxu0 0
    %795 = vmatpush.bf16.msra.mxu0 0
    %796 = vmatpush.bf16.msra.mxu0 0
    %797 = vmatpush.bf16.msra.mxu0 %v785
    %798 = vmatpush.bf16.msra.mxu0 %v784
    %799 = vmatmul.bf16.gmra.mxu0 %v789
    %v800 = vpop.f32.mrf.mxu0
    %v801 = vadd.f32 0.0, %v800
    %v802 = vpop.f32.mrf.mxu0
    %803 = vdwg.mxu0
    %v804 = vadd.f32 %v775, %v801
    %v805 = vxor.u32 %v804, 2147483648
    %v806 = vmul.f32 %v805, 1.442695
    %v807 = vpow.pop %v806
    %v808 = vadd.f32 %v807, 1.0
    %v809 = vrcp.pop %v808
    %v810 = vmul.f32 %v808, %v809
    %v811 = vsub.f32 1.0, %v810
    %v812 = vmul.f32 %v809, %v811
    %v813 = vadd.f32 %v809, %v812
    %vm814 = vweird.f32 %v808
    %vm815 = vweird.f32 %v809
    %vm816 = vmor %vm814, %vm815
    %v817 = vsel %vm816, %v809, %v813
    %v818 = vand.u32 2147483647, %v808
    %vm819 = vcmp.eq.f32.partialorder %v818, 8.507059e+37
    %v820 = vand.u32 %v808, 2147483648
    %v821 = vor.u32 1.1754944e-38, %v820
    %v822 = vsel %vm819, %v821, %v817
    %v823 = vmul.f32 1.0, %v822
    %v824 = vtanh.pop %v804
    %v825 = vmul.f32 %v823, 0.0
    %827 = vrot.lane.b32.xlu0 %v824, 32
    %v828 = vpop.permute.xlu0 %827
    %v830 = vmul.f32 %v823, %v828
    %832 = vrot.lane.b32.xlu0 %v830, 32
    %v833 = vpop.permute.xlu0 %832
    %v835 = vadd.f32 %v825, %v833
    %v836 = vtanh.pop %v835
    %838 = vrot.lane.b32.xlu0 %v836, 32
    %v839 = vpop.permute.xlu0 %838
    %v841 = vmul.f32 %v823, %v839
    %843 = vrot.lane.b32.xlu0 %v841, 64
    %v844 = vpop.permute.xlu0 %843
    %846 = vst.msk [vmem:[#allocation2] sm:$0xff] %vm721, %v844
    %s847 = scalar_lea.vmem [#allocation3], 8
    %v848 = vld [vmem:[%s847] sm:$0xff]
    %v849 = vpack.c.bf16 %v841, %v841
    %851 = vrot.lane.b32.xlu0 %v849, 64
    %v852 = vpop.permute.xlu0 %851
    %v854 = vsel %vm721, %v852, 0
    %856 = vmatpush.bf16.msra.mxu0 0
    %857 = vmatpush.bf16.msra.mxu0 0
    %858 = vmatpush.bf16.msra.mxu0 0
    %859 = vmatpush.bf16.msra.mxu0 0
    %860 = vmatpush.bf16.msra.mxu0 0
    %861 = vmatpush.bf16.msra.mxu0 0
    %862 = vmatpush.bf16.msra.mxu0 %v785
    %863 = vmatpush.bf16.msra.mxu0 %v784
    %864 = vmatmul.bf16.gmra.mxu0 %v854
    %v865 = vpop.f32.mrf.mxu0
    %v866 = vadd.f32 0.0, %v865
    %v867 = vpop.f32.mrf.mxu0
    %868 = vdwg.mxu0
    %v869 = vadd.f32 %v848, %v866
    %v870 = vxor.u32 %v869, 2147483648
    %v871 = vmul.f32 %v870, 1.442695
    %v872 = vpow.pop %v871
    %v873 = vadd.f32 %v872, 1.0
    %v874 = vrcp.pop %v873
    %v875 = vmul.f32 %v873, %v874
    %v876 = vsub.f32 1.0, %v875
    %v877 = vmul.f32 %v874, %v876
    %v878 = vadd.f32 %v874, %v877
    %vm879 = vweird.f32 %v873
    %vm880 = vweird.f32 %v874
    %vm881 = vmor %vm879, %vm880
    %v882 = vsel %vm881, %v874, %v878
    %v883 = vand.u32 2147483647, %v873
    %vm884 = vcmp.eq.f32.partialorder %v883, 8.507059e+37
    %v885 = vand.u32 %v873, 2147483648
    %v886 = vor.u32 1.1754944e-38, %v885
    %v887 = vsel %vm884, %v886, %v882
    %v888 = vmul.f32 1.0, %v887
    %v889 = vtanh.pop %v869
    %v890 = vmul.f32 %v888, %v835
    %892 = vrot.lane.b32.xlu0 %v889, 32
    %v893 = vpop.permute.xlu0 %892
    %v895 = vmul.f32 %v888, %v893
    %897 = vrot.lane.b32.xlu0 %v895, 32
    %v898 = vpop.permute.xlu0 %897
    %v900 = vadd.f32 %v890, %v898
    %v901 = vtanh.pop %v900
    %903 = vrot.lane.b32.xlu0 %v901, 32
    %v904 = vpop.permute.xlu0 %903
    %v906 = vmul.f32 %v888, %v904
    %908 = vrot.lane.b32.xlu0 %v906, 64
    %v909 = vpop.permute.xlu0 %908
    %s911 = scalar_lea.vmem [#allocation2], 8
    %912 = vst.msk [vmem:[%s911] sm:$0xff] %vm721, %v909
    %s913 = scalar_lea.vmem [#allocation3], 16
    %v914 = vld [vmem:[%s913] sm:$0xff]
    %v915 = vpack.c.bf16 %v906, %v906
    %917 = vrot.lane.b32.xlu0 %v915, 64
    %v918 = vpop.permute.xlu0 %917
    %v920 = vsel %vm721, %v918, 0
    %922 = vmatpush.bf16.msra.mxu0 0
    %923 = vmatpush.bf16.msra.mxu0 0
    %924 = vmatpush.bf16.msra.mxu0 0
    %925 = vmatpush.bf16.msra.mxu0 0
    %926 = vmatpush.bf16.msra.mxu0 0
    %927 = vmatpush.bf16.msra.mxu0 0
    %928 = vmatpush.bf16.msra.mxu0 %v785
    %929 = vmatpush.bf16.msra.mxu0 %v784
    %930 = vmatmul.bf16.gmra.mxu0 %v920
    %v931 = vpop.f32.mrf.mxu0
    %v932 = vadd.f32 0.0, %v931
    %v933 = vpop.f32.mrf.mxu0
    %934 = vdwg.mxu0
    %v935 = vadd.f32 %v914, %v932
    %v936 = vxor.u32 %v935, 2147483648
    %v937 = vmul.f32 %v936, 1.442695
    %v938 = vpow.pop %v937
    %v939 = vadd.f32 %v938, 1.0
    %v940 = vrcp.pop %v939
    %v941 = vmul.f32 %v939, %v940
    %v942 = vsub.f32 1.0, %v941
    %v943 = vmul.f32 %v940, %v942
    %v944 = vadd.f32 %v940, %v943
    %vm945 = vweird.f32 %v939
    %vm946 = vweird.f32 %v940
    %vm947 = vmor %vm945, %vm946
    %v948 = vsel %vm947, %v940, %v944
    %v949 = vand.u32 2147483647, %v939
    %vm950 = vcmp.eq.f32.partialorder %v949, 8.507059e+37
    %v951 = vand.u32 %v939, 2147483648
    %v952 = vor.u32 1.1754944e-38, %v951
    %v953 = vsel %vm950, %v952, %v948
    %v954 = vmul.f32 1.0, %v953
    %v955 = vtanh.pop %v935
    %v956 = vmul.f32 %v954, %v900
    %958 = vrot.lane.b32.xlu0 %v955, 32
    %v959 = vpop.permute.xlu0 %958
    %v961 = vmul.f32 %v954, %v959
    %963 = vrot.lane.b32.xlu0 %v961, 32
    %v964 = vpop.permute.xlu0 %963
    %v966 = vadd.f32 %v956, %v964
    %v967 = vtanh.pop %v966
    %969 = vrot.lane.b32.xlu0 %v967, 32
    %v970 = vpop.permute.xlu0 %969
    %v972 = vmul.f32 %v954, %v970
    %974 = vrot.lane.b32.xlu0 %v972, 64
    %v975 = vpop.permute.xlu0 %974
    %s977 = scalar_lea.vmem [#allocation2], 16
    %978 = vst.msk [vmem:[%s977] sm:$0xff] %vm721, %v975
    %s979 = scalar_lea.vmem [#allocation3], 24
    %v980 = vld [vmem:[%s979] sm:$0xff]
    %v981 = vpack.c.bf16 %v972, %v972
    %983 = vrot.lane.b32.xlu0 %v981, 64
    %v984 = vpop.permute.xlu0 %983
    %v986 = vsel %vm721, %v984, 0
    %988 = vmatpush.bf16.msra.mxu0 0
    %989 = vmatpush.bf16.msra.mxu0 0
    %990 = vmatpush.bf16.msra.mxu0 0
    %991 = vmatpush.bf16.msra.mxu0 0
    %992 = vmatpush.bf16.msra.mxu0 0
    %993 = vmatpush.bf16.msra.mxu0 0
    %994 = vmatpush.bf16.msra.mxu0 %v785
    %995 = vmatpush.bf16.msra.mxu0 %v784
    %996 = vmatmul.bf16.gmra.mxu0 %v986
    %v997 = vpop.f32.mrf.mxu0
    %v998 = vadd.f32 0.0, %v997
    %v999 = vpop.f32.mrf.mxu0
    %1000 = vdwg.mxu0
    %v1001 = vadd.f32 %v980, %v998
    %v1002 = vxor.u32 %v1001, 2147483648
    %v1003 = vmul.f32 %v1002, 1.442695
    %v1004 = vpow.pop %v1003
    %v1005 = vadd.f32 %v1004, 1.0
    %v1006 = vrcp.pop %v1005
    %v1007 = vmul.f32 %v1005, %v1006
    %v1008 = vsub.f32 1.0, %v1007
    %v1009 = vmul.f32 %v1006, %v1008
    %v1010 = vadd.f32 %v1006, %v1009
    %vm1011 = vweird.f32 %v1005
    %vm1012 = vweird.f32 %v1006
    %vm1013 = vmor %vm1011, %vm1012
    %v1014 = vsel %vm1013, %v1006, %v1010
    %v1015 = vand.u32 2147483647, %v1005
    %vm1016 = vcmp.eq.f32.partialorder %v1015, 8.507059e+37
    %v1017 = vand.u32 %v1005, 2147483648
    %v1018 = vor.u32 1.1754944e-38, %v1017
    %v1019 = vsel %vm1016, %v1018, %v1014
    %v1020 = vmul.f32 1.0, %v1019
    %v1021 = vtanh.pop %v1001
    %v1022 = vmul.f32 %v1020, %v966
    %1024 = vrot.lane.b32.xlu0 %v1021, 32
    %v1025 = vpop.permute.xlu0 %1024
    %v1027 = vmul.f32 %v1020, %v1025
    %1029 = vrot.lane.b32.xlu0 %v1027, 32
    %v1030 = vpop.permute.xlu0 %1029
    %v1032 = vadd.f32 %v1022, %v1030
    %v1033 = vtanh.pop %v1032
    %1035 = vrot.lane.b32.xlu0 %v1033, 32
    %v1036 = vpop.permute.xlu0 %1035
    %v1038 = vmul.f32 %v1020, %v1036
    %1040 = vrot.lane.b32.xlu0 %v1038, 64
    %v1041 = vpop.permute.xlu0 %1040
    %s1043 = scalar_lea.vmem [#allocation2], 24
    %1044 = vst.msk [vmem:[%s1043] sm:$0xff] %vm721, %v1041
    %s1045 = scalar_lea.vmem [#allocation3], 32
    %v1046 = vld [vmem:[%s1045] sm:$0xff]
    %v1047 = vpack.c.bf16 %v1038, %v1038
    %1049 = vrot.lane.b32.xlu0 %v1047, 64
    %v1050 = vpop.permute.xlu0 %1049
    %v1052 = vsel %vm721, %v1050, 0
    %1054 = vmatpush.bf16.msra.mxu0 0
    %1055 = vmatpush.bf16.msra.mxu0 0
    %1056 = vmatpush.bf16.msra.mxu0 0
    %1057 = vmatpush.bf16.msra.mxu0 0
    %1058 = vmatpush.bf16.msra.mxu0 0
    %1059 = vmatpush.bf16.msra.mxu0 0
    %1060 = vmatpush.bf16.msra.mxu0 %v785
    %1061 = vmatpush.bf16.msra.mxu0 %v784
    %1062 = vmatmul.bf16.gmra.mxu0 %v1052
    %v1063 = vpop.f32.mrf.mxu0
    %v1064 = vadd.f32 0.0, %v1063
    %v1065 = vpop.f32.mrf.mxu0
    %1066 = vdwg.mxu0
    %v1067 = vadd.f32 %v1046, %v1064
    %v1068 = vxor.u32 %v1067, 2147483648
    %v1069 = vmul.f32 %v1068, 1.442695
    %v1070 = vpow.pop %v1069
    %v1071 = vadd.f32 %v1070, 1.0
    %v1072 = vrcp.pop %v1071
    %v1073 = vmul.f32 %v1071, %v1072
    %v1074 = vsub.f32 1.0, %v1073
    %v1075 = vmul.f32 %v1072, %v1074
    %v1076 = vadd.f32 %v1072, %v1075
    %vm1077 = vweird.f32 %v1071
    %vm1078 = vweird.f32 %v1072
    %vm1079 = vmor %vm1077, %vm1078
    %v1080 = vsel %vm1079, %v1072, %v1076
    %v1081 = vand.u32 2147483647, %v1071
    %vm1082 = vcmp.eq.f32.partialorder %v1081, 8.507059e+37
    %v1083 = vand.u32 %v1071, 2147483648
    %v1084 = vor.u32 1.1754944e-38, %v1083
    %v1085 = vsel %vm1082, %v1084, %v1080
    %v1086 = vmul.f32 1.0, %v1085
    %v1087 = vtanh.pop %v1067
    %v1088 = vmul.f32 %v1086, %v1032
    %1090 = vrot.lane.b32.xlu0 %v1087, 32
    %v1091 = vpop.permute.xlu0 %1090
    %v1093 = vmul.f32 %v1086, %v1091
    %1095 = vrot.lane.b32.xlu0 %v1093, 32
    %v1096 = vpop.permute.xlu0 %1095
    %v1098 = vadd.f32 %v1088, %v1096
    %v1099 = vtanh.pop %v1098
    %1101 = vrot.lane.b32.xlu0 %v1099, 32
    %v1102 = vpop.permute.xlu0 %1101
    %v1104 = vmul.f32 %v1086, %v1102
    %1106 = vrot.lane.b32.xlu0 %v1104, 64
    %v1107 = vpop.permute.xlu0 %1106
    %s1109 = scalar_lea.vmem [#allocation2], 32
    %1110 = vst.msk [vmem:[%s1109] sm:$0xff] %vm721, %v1107
    %s1111 = scalar_lea.vmem [#allocation3], 40
    %v1112 = vld [vmem:[%s1111] sm:$0xff]
    %v1113 = vpack.c.bf16 %v1104, %v1104
    %1115 = vrot.lane.b32.xlu0 %v1113, 64
    %v1116 = vpop.permute.xlu0 %1115
    %v1118 = vsel %vm721, %v1116, 0
    %1120 = vmatpush.bf16.msra.mxu0 0
    %1121 = vmatpush.bf16.msra.mxu0 0
    %1122 = vmatpush.bf16.msra.mxu0 0
    %1123 = vmatpush.bf16.msra.mxu0 0
    %1124 = vmatpush.bf16.msra.mxu0 0
    %1125 = vmatpush.bf16.msra.mxu0 0
    %1126 = vmatpush.bf16.msra.mxu0 %v785
    %1127 = vmatpush.bf16.msra.mxu0 %v784
    %1128 = vmatmul.bf16.gmra.mxu0 %v1118
    %v1129 = vpop.f32.mrf.mxu0
    %v1130 = vadd.f32 0.0, %v1129
    %v1131 = vpop.f32.mrf.mxu0
    %1132 = vdwg.mxu0
    %v1133 = vadd.f32 %v1112, %v1130
    %v1134 = vxor.u32 %v1133, 2147483648
    %v1135 = vmul.f32 %v1134, 1.442695
    %v1136 = vpow.pop %v1135
    %v1137 = vadd.f32 %v1136, 1.0
    %v1138 = vrcp.pop %v1137
    %v1139 = vmul.f32 %v1137, %v1138
    %v1140 = vsub.f32 1.0, %v1139
    %v1141 = vmul.f32 %v1138, %v1140
    %v1142 = vadd.f32 %v1138, %v1141
    %vm1143 = vweird.f32 %v1137
    %vm1144 = vweird.f32 %v1138
    %vm1145 = vmor %vm1143, %vm1144
    %v1146 = vsel %vm1145, %v1138, %v1142
    %v1147 = vand.u32 2147483647, %v1137
    %vm1148 = vcmp.eq.f32.partialorder %v1147, 8.507059e+37
    %v1149 = vand.u32 %v1137, 2147483648
    %v1150 = vor.u32 1.1754944e-38, %v1149
    %v1151 = vsel %vm1148, %v1150, %v1146
    %v1152 = vmul.f32 1.0, %v1151
    %v1153 = vtanh.pop %v1133
    %v1154 = vmul.f32 %v1152, %v1098
    %1156 = vrot.lane.b32.xlu0 %v1153, 32
    %v1157 = vpop.permute.xlu0 %1156
    %v1159 = vmul.f32 %v1152, %v1157
    %1161 = vrot.lane.b32.xlu0 %v1159, 32
    %v1162 = vpop.permute.xlu0 %1161
    %v1164 = vadd.f32 %v1154, %v1162
    %v1165 = vtanh.pop %v1164
    %1167 = vrot.lane.b32.xlu0 %v1165, 32
    %v1168 = vpop.permute.xlu0 %1167
    %v1170 = vmul.f32 %v1152, %v1168
    %1172 = vrot.lane.b32.xlu0 %v1170, 64
    %v1173 = vpop.permute.xlu0 %1172
    %s1175 = scalar_lea.vmem [#allocation2], 40
    %1176 = vst.msk [vmem:[%s1175] sm:$0xff] %vm721, %v1173
    %s1177 = scalar_lea.vmem [#allocation3], 48
    %v1178 = vld [vmem:[%s1177] sm:$0xff]
    %v1179 = vpack.c.bf16 %v1170, %v1170
    %1181 = vrot.lane.b32.xlu0 %v1179, 64
    %v1182 = vpop.permute.xlu0 %1181
    %v1184 = vsel %vm721, %v1182, 0
    %1186 = vmatpush.bf16.msra.mxu0 0
    %1187 = vmatpush.bf16.msra.mxu0 0
    %1188 = vmatpush.bf16.msra.mxu0 0
    %1189 = vmatpush.bf16.msra.mxu0 0
    %1190 = vmatpush.bf16.msra.mxu0 0
    %1191 = vmatpush.bf16.msra.mxu0 0
    %1192 = vmatpush.bf16.msra.mxu0 %v785
    %1193 = vmatpush.bf16.msra.mxu0 %v784
    %1194 = vmatmul.bf16.gmra.mxu0 %v1184
    %v1195 = vpop.f32.mrf.mxu0
    %v1196 = vadd.f32 0.0, %v1195
    %v1197 = vpop.f32.mrf.mxu0
    %1198 = vdwg.mxu0
    %v1199 = vadd.f32 %v1178, %v1196
    %v1200 = vxor.u32 %v1199, 2147483648
    %v1201 = vmul.f32 %v1200, 1.442695
    %v1202 = vpow.pop %v1201
    %v1203 = vadd.f32 %v1202, 1.0
    %v1204 = vrcp.pop %v1203
    %v1205 = vmul.f32 %v1203, %v1204
    %v1206 = vsub.f32 1.0, %v1205
    %v1207 = vmul.f32 %v1204, %v1206
    %v1208 = vadd.f32 %v1204, %v1207
    %vm1209 = vweird.f32 %v1203
    %vm1210 = vweird.f32 %v1204
    %vm1211 = vmor %vm1209, %vm1210
    %v1212 = vsel %vm1211, %v1204, %v1208
    %v1213 = vand.u32 2147483647, %v1203
    %vm1214 = vcmp.eq.f32.partialorder %v1213, 8.507059e+37
    %v1215 = vand.u32 %v1203, 2147483648
    %v1216 = vor.u32 1.1754944e-38, %v1215
    %v1217 = vsel %vm1214, %v1216, %v1212
    %v1218 = vmul.f32 1.0, %v1217
    %v1219 = vtanh.pop %v1199
    %v1220 = vmul.f32 %v1218, %v1164
    %1222 = vrot.lane.b32.xlu0 %v1219, 32
    %v1223 = vpop.permute.xlu0 %1222
    %v1225 = vmul.f32 %v1218, %v1223
    %1227 = vrot.lane.b32.xlu0 %v1225, 32
    %v1228 = vpop.permute.xlu0 %1227
    %v1230 = vadd.f32 %v1220, %v1228
    %v1231 = vtanh.pop %v1230
    %1233 = vrot.lane.b32.xlu0 %v1231, 32
    %v1234 = vpop.permute.xlu0 %1233
    %v1236 = vmul.f32 %v1218, %v1234
    %1238 = vrot.lane.b32.xlu0 %v1236, 64
    %v1239 = vpop.permute.xlu0 %1238
    %s1241 = scalar_lea.vmem [#allocation2], 48
    %1242 = vst.msk [vmem:[%s1241] sm:$0xff] %vm721, %v1239
    %s1243 = scalar_lea.vmem [#allocation3], 56
    %v1244 = vld [vmem:[%s1243] sm:$0xff]
    %v1245 = vpack.c.bf16 %v1236, %v1236
    %1247 = vrot.lane.b32.xlu0 %v1245, 64
    %v1248 = vpop.permute.xlu0 %1247
    %v1250 = vsel %vm721, %v1248, 0
    %1252 = vmatpush.bf16.msra.mxu0 0
    %1253 = vmatpush.bf16.msra.mxu0 0
    %1254 = vmatpush.bf16.msra.mxu0 0
    %1255 = vmatpush.bf16.msra.mxu0 0
    %1256 = vmatpush.bf16.msra.mxu0 0
    %1257 = vmatpush.bf16.msra.mxu0 0
    %1258 = vmatpush.bf16.msra.mxu0 %v785
    %1259 = vmatpush.bf16.msra.mxu0 %v784
    %1260 = vmatmul.bf16.gmra.mxu0 %v1250
    %v1261 = vpop.f32.mrf.mxu0
    %v1262 = vadd.f32 0.0, %v1261
    %v1263 = vpop.f32.mrf.mxu0
    %1264 = vdwg.mxu0
    %v1265 = vadd.f32 %v1244, %v1262
    %v1266 = vxor.u32 %v1265, 2147483648
    %v1267 = vmul.f32 %v1266, 1.442695
    %v1268 = vpow.pop %v1267
    %v1269 = vadd.f32 %v1268, 1.0
    %v1270 = vrcp.pop %v1269
    %v1271 = vmul.f32 %v1269, %v1270
    %v1272 = vsub.f32 1.0, %v1271
    %v1273 = vmul.f32 %v1270, %v1272
    %v1274 = vadd.f32 %v1270, %v1273
    %vm1275 = vweird.f32 %v1269
    %vm1276 = vweird.f32 %v1270
    %vm1277 = vmor %vm1275, %vm1276
    %v1278 = vsel %vm1277, %v1270, %v1274
    %v1279 = vand.u32 2147483647, %v1269
    %vm1280 = vcmp.eq.f32.partialorder %v1279, 8.507059e+37
    %v1281 = vand.u32 %v1269, 2147483648
    %v1282 = vor.u32 1.1754944e-38, %v1281
    %v1283 = vsel %vm1280, %v1282, %v1278
    %v1284 = vmul.f32 1.0, %v1283
    %v1285 = vtanh.pop %v1265
    %v1286 = vmul.f32 %v1284, %v1230
    %1288 = vrot.lane.b32.xlu0 %v1285, 32
    %v1289 = vpop.permute.xlu0 %1288
    %v1291 = vmul.f32 %v1284, %v1289
    %1293 = vrot.lane.b32.xlu0 %v1291, 32
    %v1294 = vpop.permute.xlu0 %1293
    %v1296 = vadd.f32 %v1286, %v1294
    %v1297 = vtanh.pop %v1296
    %1299 = vrot.lane.b32.xlu0 %v1297, 32
    %v1300 = vpop.permute.xlu0 %1299
    %v1302 = vmul.f32 %v1284, %v1300
    %1304 = vrot.lane.b32.xlu0 %v1302, 64
    %v1305 = vpop.permute.xlu0 %1304
    %s1307 = scalar_lea.vmem [#allocation2], 56
    %1308 = vst.msk [vmem:[%s1307] sm:$0xff] %vm721, %v1305
    %v1309 = vld [vmem:[#allocation2] sm:$0xff]
    %v1310 = vld [vmem:[#allocation2 + $0x8] sm:$0xff]
    %v1311 = vld [vmem:[#allocation2 + $0x10] sm:$0xff]
    %v1312 = vld [vmem:[#allocation2 + $0x18] sm:$0xff]
    %v1313 = vld [vmem:[#allocation2 + $0x20] sm:$0xff]
    %v1314 = vld [vmem:[#allocation2 + $0x28] sm:$0xff]
    %v1315 = vld [vmem:[#allocation2 + $0x30] sm:$0xff]
    %v1316 = vld [vmem:[#allocation2 + $0x38] sm:$0xff]
    %v1317 = vpack.c.bf16 %v1310, %v1309
    %v1318 = vpack.c.bf16 %v1312, %v1311
    %v1319 = vpack.c.bf16 %v1314, %v1313
    %v1320 = vpack.c.bf16 %v1316, %v1315
    %s1321 = scalar_lea.vmem %s5, 16
    %v1322 = vld [vmem:[%s1321] sm:$0xf]
    %v1323 = vld [vmem:[%s1321 + $0x4] sm:$0xf]
    %v1324 = vld [vmem:[%s1321 + $0x8] sm:$0xf]
    %v1325 = vld [vmem:[%s1321 + $0xc] sm:$0xf]
    %s1326 = scalar_lea.vmem %s7, 1
    %v1327 = vld [vmem:[%s1326] sm:$0x1]
    %v1329 = vperm.slane %v1327, 0
    %v1335 = vunpack.c.l.b16 %v1322
    %v1336 = vunpack.c.l.b16 %v1323
    %v1337 = vunpack.c.l.b16 %v1324
    %v1338 = vunpack.c.l.b16 %v1325
    %v1339 = vpack.c.b16 %v1336, %v1335
    %v1340 = vpack.c.b16 %v1338, %v1337
    %v1344 = vsel %vm721, %v1317, 0
    %v1347 = vsel %vm721, %v1318, 0
    %v1350 = vsel %vm721, %v1319, 0
    %v1353 = vsel %vm721, %v1320, 0
    %1355 = vmatpush.bf16.msra.mxu0 0
    %1356 = vmatpush.bf16.msra.mxu0 0
    %1357 = vmatpush.bf16.msra.mxu0 0
    %1358 = vmatpush.bf16.msra.mxu0 0
    %1359 = vmatpush.bf16.msra.mxu0 0
    %1360 = vmatpush.bf16.msra.mxu0 0
    %1361 = vmatpush.bf16.msra.mxu0 %v1340
    %1362 = vmatpush.bf16.msra.mxu0 %v1339
    %1363 = vmatmul.bf16.gmra.mxu0 %v1344
    %v1364 = vpop.f32.mrf.mxu0
    %v1365 = vadd.f32 %v1329, %v1364
    %v1366 = vpop.f32.mrf.mxu0
    %v1367 = vadd.f32 %v1329, %v1366
    %1368 = vmatmul.bf16.gmra.mxu0 %v1347
    %v1369 = vpop.f32.mrf.mxu0
    %v1370 = vadd.f32 %v1329, %v1369
    %v1371 = vpop.f32.mrf.mxu0
    %v1372 = vadd.f32 %v1329, %v1371
    %1373 = vmatmul.bf16.gmra.mxu0 %v1350
    %v1374 = vpop.f32.mrf.mxu0
    %v1375 = vadd.f32 %v1329, %v1374
    %v1376 = vpop.f32.mrf.mxu0
    %v1377 = vadd.f32 %v1329, %v1376
    %1378 = vmatmul.bf16.gmra.mxu0 %v1353
    %v1379 = vpop.f32.mrf.mxu0
    %v1380 = vadd.f32 %v1329, %v1379
    %v1381 = vpop.f32.mrf.mxu0
    %v1382 = vadd.f32 %v1329, %v1381
    %1383 = vdwg.mxu0
    %1384 = vst [vmem:[#allocation3] sm:$0xff] %v1365
    %1385 = vst [vmem:[#allocation3 + $0x8] sm:$0xff] %v1367
    %1386 = vst [vmem:[#allocation3 + $0x10] sm:$0xff] %v1370
    %1387 = vst [vmem:[#allocation3 + $0x18] sm:$0xff] %v1372
    %1388 = vst [vmem:[#allocation3 + $0x20] sm:$0xff] %v1375
    %1389 = vst [vmem:[#allocation3 + $0x28] sm:$0xff] %v1377
    %1390 = vst [vmem:[#allocation3 + $0x30] sm:$0xff] %v1380
    %1391 = vst [vmem:[#allocation3 + $0x38] sm:$0xff] %v1382
    %s1392 = scalar_lea.vmem [#allocation8], 16
    %v1393 = vld [vmem:[%s1392] sm:$0xf]
    %v1394 = vld [vmem:[%s1392 + $0x4] sm:$0xf]
    %v1395 = vld [vmem:[%s1392 + $0x8] sm:$0xf]
    %v1396 = vld [vmem:[%s1392 + $0xc] sm:$0xf]
    %v1397 = vld [vmem:[#allocation3] sm:$0xff]
    %v1402 = vunpack.c.l.b16 %v1393
    %v1403 = vunpack.c.l.b16 %v1394
    %v1404 = vunpack.c.l.b16 %v1395
    %v1405 = vunpack.c.l.b16 %v1396
    %v1406 = vpack.c.b16 %v1403, %v1402
    %v1407 = vpack.c.b16 %v1405, %v1404
    %1410 = vmatpush.bf16.msra.mxu0 0
    %1411 = vmatpush.bf16.msra.mxu0 0
    %1412 = vmatpush.bf16.msra.mxu0 0
    %1413 = vmatpush.bf16.msra.mxu0 0
    %1414 = vmatpush.bf16.msra.mxu0 0
    %1415 = vmatpush.bf16.msra.mxu0 0
    %1416 = vmatpush.bf16.msra.mxu0 %v1407
    %1417 = vmatpush.bf16.msra.mxu0 %v1406
    %1418 = vmatmul.bf16.gmra.mxu0 %v789
    %v1419 = vpop.f32.mrf.mxu0
    %v1420 = vadd.f32 0.0, %v1419
    %v1421 = vpop.f32.mrf.mxu0
    %1422 = vdwg.mxu0
    %v1423 = vadd.f32 %v1397, %v1420
    %v1424 = vxor.u32 %v1423, 2147483648
    %v1425 = vmul.f32 %v1424, 1.442695
    %v1426 = vpow.pop %v1425
    %v1427 = vadd.f32 %v1426, 1.0
    %v1428 = vrcp.pop %v1427
    %v1429 = vmul.f32 %v1427, %v1428
    %v1430 = vsub.f32 1.0, %v1429
    %v1431 = vmul.f32 %v1428, %v1430
    %v1432 = vadd.f32 %v1428, %v1431
    %vm1433 = vweird.f32 %v1427
    %vm1434 = vweird.f32 %v1428
    %vm1435 = vmor %vm1433, %vm1434
    %v1436 = vsel %vm1435, %v1428, %v1432
    %v1437 = vand.u32 2147483647, %v1427
    %vm1438 = vcmp.eq.f32.partialorder %v1437, 8.507059e+37
    %v1439 = vand.u32 %v1427, 2147483648
    %v1440 = vor.u32 1.1754944e-38, %v1439
    %v1441 = vsel %vm1438, %v1440, %v1436
    %v1442 = vmul.f32 1.0, %v1441
    %v1443 = vtanh.pop %v1423
    %v1444 = vmul.f32 %v1442, 0.0
    %1446 = vrot.lane.b32.xlu0 %v1443, 32
    %v1447 = vpop.permute.xlu0 %1446
    %v1449 = vmul.f32 %v1442, %v1447
    %1451 = vrot.lane.b32.xlu0 %v1449, 32
    %v1452 = vpop.permute.xlu0 %1451
    %v1454 = vadd.f32 %v1444, %v1452
    %v1455 = vtanh.pop %v1454
    %1457 = vrot.lane.b32.xlu0 %v1455, 32
    %v1458 = vpop.permute.xlu0 %1457
    %v1460 = vmul.f32 %v1442, %v1458
    %1462 = vrot.lane.b32.xlu0 %v1460, 64
    %v1463 = vpop.permute.xlu0 %1462
    %1465 = vst.msk [vmem:[#allocation2] sm:$0xff] %vm721, %v1463
    %v1466 = vld [vmem:[%s847] sm:$0xff]
    %v1467 = vpack.c.bf16 %v1460, %v1460
    %1469 = vrot.lane.b32.xlu0 %v1467, 64
    %v1470 = vpop.permute.xlu0 %1469
    %v1472 = vsel %vm721, %v1470, 0
    %1474 = vmatpush.bf16.msra.mxu0 0
    %1475 = vmatpush.bf16.msra.mxu0 0
    %1476 = vmatpush.bf16.msra.mxu0 0
    %1477 = vmatpush.bf16.msra.mxu0 0
    %1478 = vmatpush.bf16.msra.mxu0 0
    %1479 = vmatpush.bf16.msra.mxu0 0
    %1480 = vmatpush.bf16.msra.mxu0 %v1407
    %1481 = vmatpush.bf16.msra.mxu0 %v1406
    %1482 = vmatmul.bf16.gmra.mxu0 %v1472
    %v1483 = vpop.f32.mrf.mxu0
    %v1484 = vadd.f32 0.0, %v1483
    %v1485 = vpop.f32.mrf.mxu0
    %1486 = vdwg.mxu0
    %v1487 = vadd.f32 %v1466, %v1484
    %v1488 = vxor.u32 %v1487, 2147483648
    %v1489 = vmul.f32 %v1488, 1.442695
    %v1490 = vpow.pop %v1489
    %v1491 = vadd.f32 %v1490, 1.0
    %v1492 = vrcp.pop %v1491
    %v1493 = vmul.f32 %v1491, %v1492
    %v1494 = vsub.f32 1.0, %v1493
    %v1495 = vmul.f32 %v1492, %v1494
    %v1496 = vadd.f32 %v1492, %v1495
    %vm1497 = vweird.f32 %v1491
    %vm1498 = vweird.f32 %v1492
    %vm1499 = vmor %vm1497, %vm1498
    %v1500 = vsel %vm1499, %v1492, %v1496
    %v1501 = vand.u32 2147483647, %v1491
    %vm1502 = vcmp.eq.f32.partialorder %v1501, 8.507059e+37
    %v1503 = vand.u32 %v1491, 2147483648
    %v1504 = vor.u32 1.1754944e-38, %v1503
    %v1505 = vsel %vm1502, %v1504, %v1500
    %v1506 = vmul.f32 1.0, %v1505
    %v1507 = vtanh.pop %v1487
    %v1508 = vmul.f32 %v1506, %v1454
    %1510 = vrot.lane.b32.xlu0 %v1507, 32
    %v1511 = vpop.permute.xlu0 %1510
    %v1513 = vmul.f32 %v1506, %v1511
    %1515 = vrot.lane.b32.xlu0 %v1513, 32
    %v1516 = vpop.permute.xlu0 %1515
    %v1518 = vadd.f32 %v1508, %v1516
    %v1519 = vtanh.pop %v1518
    %1521 = vrot.lane.b32.xlu0 %v1519, 32
    %v1522 = vpop.permute.xlu0 %1521
    %v1524 = vmul.f32 %v1506, %v1522
    %1526 = vrot.lane.b32.xlu0 %v1524, 64
    %v1527 = vpop.permute.xlu0 %1526
    %1529 = vst.msk [vmem:[%s911] sm:$0xff] %vm721, %v1527
    %v1530 = vld [vmem:[%s913] sm:$0xff]
    %v1531 = vpack.c.bf16 %v1524, %v1524
    %1533 = vrot.lane.b32.xlu0 %v1531, 64
    %v1534 = vpop.permute.xlu0 %1533
    %v1536 = vsel %vm721, %v1534, 0
    %1538 = vmatpush.bf16.msra.mxu0 0
    %1539 = vmatpush.bf16.msra.mxu0 0
    %1540 = vmatpush.bf16.msra.mxu0 0
    %1541 = vmatpush.bf16.msra.mxu0 0
    %1542 = vmatpush.bf16.msra.mxu0 0
    %1543 = vmatpush.bf16.msra.mxu0 0
    %1544 = vmatpush.bf16.msra.mxu0 %v1407
    %1545 = vmatpush.bf16.msra.mxu0 %v1406
    %1546 = vmatmul.bf16.gmra.mxu0 %v1536
    %v1547 = vpop.f32.mrf.mxu0
    %v1548 = vadd.f32 0.0, %v1547
    %v1549 = vpop.f32.mrf.mxu0
    %1550 = vdwg.mxu0
    %v1551 = vadd.f32 %v1530, %v1548
    %v1552 = vxor.u32 %v1551, 2147483648
    %v1553 = vmul.f32 %v1552, 1.442695
    %v1554 = vpow.pop %v1553
    %v1555 = vadd.f32 %v1554, 1.0
    %v1556 = vrcp.pop %v1555
    %v1557 = vmul.f32 %v1555, %v1556
    %v1558 = vsub.f32 1.0, %v1557
    %v1559 = vmul.f32 %v1556, %v1558
    %v1560 = vadd.f32 %v1556, %v1559
    %vm1561 = vweird.f32 %v1555
    %vm1562 = vweird.f32 %v1556
    %vm1563 = vmor %vm1561, %vm1562
    %v1564 = vsel %vm1563, %v1556, %v1560
    %v1565 = vand.u32 2147483647, %v1555
    %vm1566 = vcmp.eq.f32.partialorder %v1565, 8.507059e+37
    %v1567 = vand.u32 %v1555, 2147483648
    %v1568 = vor.u32 1.1754944e-38, %v1567
    %v1569 = vsel %vm1566, %v1568, %v1564
    %v1570 = vmul.f32 1.0, %v1569
    %v1571 = vtanh.pop %v1551
    %v1572 = vmul.f32 %v1570, %v1518
    %1574 = vrot.lane.b32.xlu0 %v1571, 32
    %v1575 = vpop.permute.xlu0 %1574
    %v1577 = vmul.f32 %v1570, %v1575
    %1579 = vrot.lane.b32.xlu0 %v1577, 32
    %v1580 = vpop.permute.xlu0 %1579
    %v1582 = vadd.f32 %v1572, %v1580
    %v1583 = vtanh.pop %v1582
    %1585 = vrot.lane.b32.xlu0 %v1583, 32
    %v1586 = vpop.permute.xlu0 %1585
    %v1588 = vmul.f32 %v1570, %v1586
    %1590 = vrot.lane.b32.xlu0 %v1588, 64
    %v1591 = vpop.permute.xlu0 %1590
    %1593 = vst.msk [vmem:[%s977] sm:$0xff] %vm721, %v1591
    %v1594 = vld [vmem:[%s979] sm:$0xff]
    %v1595 = vpack.c.bf16 %v1588, %v1588
    %1597 = vrot.lane.b32.xlu0 %v1595, 64
    %v1598 = vpop.permute.xlu0 %1597
    %v1600 = vsel %vm721, %v1598, 0
    %1602 = vmatpush.bf16.msra.mxu0 0
    %1603 = vmatpush.bf16.msra.mxu0 0
    %1604 = vmatpush.bf16.msra.mxu0 0
    %1605 = vmatpush.bf16.msra.mxu0 0
    %1606 = vmatpush.bf16.msra.mxu0 0
    %1607 = vmatpush.bf16.msra.mxu0 0
    %1608 = vmatpush.bf16.msra.mxu0 %v1407
    %1609 = vmatpush.bf16.msra.mxu0 %v1406
    %1610 = vmatmul.bf16.gmra.mxu0 %v1600
    %v1611 = vpop.f32.mrf.mxu0
    %v1612 = vadd.f32 0.0, %v1611
    %v1613 = vpop.f32.mrf.mxu0
    %1614 = vdwg.mxu0
    %v1615 = vadd.f32 %v1594, %v1612
    %v1616 = vxor.u32 %v1615, 2147483648
    %v1617 = vmul.f32 %v1616, 1.442695
    %v1618 = vpow.pop %v1617
    %v1619 = vadd.f32 %v1618, 1.0
    %v1620 = vrcp.pop %v1619
    %v1621 = vmul.f32 %v1619, %v1620
    %v1622 = vsub.f32 1.0, %v1621
    %v1623 = vmul.f32 %v1620, %v1622
    %v1624 = vadd.f32 %v1620, %v1623
    %vm1625 = vweird.f32 %v1619
    %vm1626 = vweird.f32 %v1620
    %vm1627 = vmor %vm1625, %vm1626
    %v1628 = vsel %vm1627, %v1620, %v1624
    %v1629 = vand.u32 2147483647, %v1619
    %vm1630 = vcmp.eq.f32.partialorder %v1629, 8.507059e+37
    %v1631 = vand.u32 %v1619, 2147483648
    %v1632 = vor.u32 1.1754944e-38, %v1631
    %v1633 = vsel %vm1630, %v1632, %v1628
    %v1634 = vmul.f32 1.0, %v1633
    %v1635 = vtanh.pop %v1615
    %v1636 = vmul.f32 %v1634, %v1582
    %1638 = vrot.lane.b32.xlu0 %v1635, 32
    %v1639 = vpop.permute.xlu0 %1638
    %v1641 = vmul.f32 %v1634, %v1639
    %1643 = vrot.lane.b32.xlu0 %v1641, 32
    %v1644 = vpop.permute.xlu0 %1643
    %v1646 = vadd.f32 %v1636, %v1644
    %v1647 = vtanh.pop %v1646
    %1649 = vrot.lane.b32.xlu0 %v1647, 32
    %v1650 = vpop.permute.xlu0 %1649
    %v1652 = vmul.f32 %v1634, %v1650
    %1654 = vrot.lane.b32.xlu0 %v1652, 64
    %v1655 = vpop.permute.xlu0 %1654
    %1657 = vst.msk [vmem:[%s1043] sm:$0xff] %vm721, %v1655
    %v1658 = vld [vmem:[%s1045] sm:$0xff]
    %v1659 = vpack.c.bf16 %v1652, %v1652
    %1661 = vrot.lane.b32.xlu0 %v1659, 64
    %v1662 = vpop.permute.xlu0 %1661
    %v1664 = vsel %vm721, %v1662, 0
    %1666 = vmatpush.bf16.msra.mxu0 0
    %1667 = vmatpush.bf16.msra.mxu0 0
    %1668 = vmatpush.bf16.msra.mxu0 0
    %1669 = vmatpush.bf16.msra.mxu0 0
    %1670 = vmatpush.bf16.msra.mxu0 0
    %1671 = vmatpush.bf16.msra.mxu0 0
    %1672 = vmatpush.bf16.msra.mxu0 %v1407
    %1673 = vmatpush.bf16.msra.mxu0 %v1406
    %1674 = vmatmul.bf16.gmra.mxu0 %v1664
    %v1675 = vpop.f32.mrf.mxu0
    %v1676 = vadd.f32 0.0, %v1675
    %v1677 = vpop.f32.mrf.mxu0
    %1678 = vdwg.mxu0
    %v1679 = vadd.f32 %v1658, %v1676
    %v1680 = vxor.u32 %v1679, 2147483648
    %v1681 = vmul.f32 %v1680, 1.442695
    %v1682 = vpow.pop %v1681
    %v1683 = vadd.f32 %v1682, 1.0
    %v1684 = vrcp.pop %v1683
    %v1685 = vmul.f32 %v1683, %v1684
    %v1686 = vsub.f32 1.0, %v1685
    %v1687 = vmul.f32 %v1684, %v1686
    %v1688 = vadd.f32 %v1684, %v1687
    %vm1689 = vweird.f32 %v1683
    %vm1690 = vweird.f32 %v1684
    %vm1691 = vmor %vm1689, %vm1690
    %v1692 = vsel %vm1691, %v1684, %v1688
    %v1693 = vand.u32 2147483647, %v1683
    %vm1694 = vcmp.eq.f32.partialorder %v1693, 8.507059e+37
    %v1695 = vand.u32 %v1683, 2147483648
    %v1696 = vor.u32 1.1754944e-38, %v1695
    %v1697 = vsel %vm1694, %v1696, %v1692
    %v1698 = vmul.f32 1.0, %v1697
    %v1699 = vtanh.pop %v1679
    %v1700 = vmul.f32 %v1698, %v1646
    %1702 = vrot.lane.b32.xlu0 %v1699, 32
    %v1703 = vpop.permute.xlu0 %1702
    %v1705 = vmul.f32 %v1698, %v1703
    %1707 = vrot.lane.b32.xlu0 %v1705, 32
    %v1708 = vpop.permute.xlu0 %1707
    %v1710 = vadd.f32 %v1700, %v1708
    %v1711 = vtanh.pop %v1710
    %1713 = vrot.lane.b32.xlu0 %v1711, 32
    %v1714 = vpop.permute.xlu0 %1713
    %v1716 = vmul.f32 %v1698, %v1714
    %1718 = vrot.lane.b32.xlu0 %v1716, 64
    %v1719 = vpop.permute.xlu0 %1718
    %1721 = vst.msk [vmem:[%s1109] sm:$0xff] %vm721, %v1719
    %v1722 = vld [vmem:[%s1111] sm:$0xff]
    %v1723 = vpack.c.bf16 %v1716, %v1716
    %1725 = vrot.lane.b32.xlu0 %v1723, 64
    %v1726 = vpop.permute.xlu0 %1725
    %v1728 = vsel %vm721, %v1726, 0
    %1730 = vmatpush.bf16.msra.mxu0 0
    %1731 = vmatpush.bf16.msra.mxu0 0
    %1732 = vmatpush.bf16.msra.mxu0 0
    %1733 = vmatpush.bf16.msra.mxu0 0
    %1734 = vmatpush.bf16.msra.mxu0 0
    %1735 = vmatpush.bf16.msra.mxu0 0
    %1736 = vmatpush.bf16.msra.mxu0 %v1407
    %1737 = vmatpush.bf16.msra.mxu0 %v1406
    %1738 = vmatmul.bf16.gmra.mxu0 %v1728
    %v1739 = vpop.f32.mrf.mxu0
    %v1740 = vadd.f32 0.0, %v1739
    %v1741 = vpop.f32.mrf.mxu0
    %1742 = vdwg.mxu0
    %v1743 = vadd.f32 %v1722, %v1740
    %v1744 = vxor.u32 %v1743, 2147483648
    %v1745 = vmul.f32 %v1744, 1.442695
    %v1746 = vpow.pop %v1745
    %v1747 = vadd.f32 %v1746, 1.0
    %v1748 = vrcp.pop %v1747
    %v1749 = vmul.f32 %v1747, %v1748
    %v1750 = vsub.f32 1.0, %v1749
    %v1751 = vmul.f32 %v1748, %v1750
    %v1752 = vadd.f32 %v1748, %v1751
    %vm1753 = vweird.f32 %v1747
    %vm1754 = vweird.f32 %v1748
    %vm1755 = vmor %vm1753, %vm1754
    %v1756 = vsel %vm1755, %v1748, %v1752
    %v1757 = vand.u32 2147483647, %v1747
    %vm1758 = vcmp.eq.f32.partialorder %v1757, 8.507059e+37
    %v1759 = vand.u32 %v1747, 2147483648
    %v1760 = vor.u32 1.1754944e-38, %v1759
    %v1761 = vsel %vm1758, %v1760, %v1756
    %v1762 = vmul.f32 1.0, %v1761
    %v1763 = vtanh.pop %v1743
    %v1764 = vmul.f32 %v1762, %v1710
    %1766 = vrot.lane.b32.xlu0 %v1763, 32
    %v1767 = vpop.permute.xlu0 %1766
    %v1769 = vmul.f32 %v1762, %v1767
    %1771 = vrot.lane.b32.xlu0 %v1769, 32
    %v1772 = vpop.permute.xlu0 %1771
    %v1774 = vadd.f32 %v1764, %v1772
    %v1775 = vtanh.pop %v1774
    %1777 = vrot.lane.b32.xlu0 %v1775, 32
    %v1778 = vpop.permute.xlu0 %1777
    %v1780 = vmul.f32 %v1762, %v1778
    %1782 = vrot.lane.b32.xlu0 %v1780, 64
    %v1783 = vpop.permute.xlu0 %1782
    %1785 = vst.msk [vmem:[%s1175] sm:$0xff] %vm721, %v1783
    %v1786 = vld [vmem:[%s1177] sm:$0xff]
    %v1787 = vpack.c.bf16 %v1780, %v1780
    %1789 = vrot.lane.b32.xlu0 %v1787, 64
    %v1790 = vpop.permute.xlu0 %1789
    %v1792 = vsel %vm721, %v1790, 0
    %1794 = vmatpush.bf16.msra.mxu0 0
    %1795 = vmatpush.bf16.msra.mxu0 0
    %1796 = vmatpush.bf16.msra.mxu0 0
    %1797 = vmatpush.bf16.msra.mxu0 0
    %1798 = vmatpush.bf16.msra.mxu0 0
    %1799 = vmatpush.bf16.msra.mxu0 0
    %1800 = vmatpush.bf16.msra.mxu0 %v1407
    %1801 = vmatpush.bf16.msra.mxu0 %v1406
    %1802 = vmatmul.bf16.gmra.mxu0 %v1792
    %v1803 = vpop.f32.mrf.mxu0
    %v1804 = vadd.f32 0.0, %v1803
    %v1805 = vpop.f32.mrf.mxu0
    %1806 = vdwg.mxu0
    %v1807 = vadd.f32 %v1786, %v1804
    %v1808 = vxor.u32 %v1807, 2147483648
    %v1809 = vmul.f32 %v1808, 1.442695
    %v1810 = vpow.pop %v1809
    %v1811 = vadd.f32 %v1810, 1.0
    %v1812 = vrcp.pop %v1811
    %v1813 = vmul.f32 %v1811, %v1812
    %v1814 = vsub.f32 1.0, %v1813
    %v1815 = vmul.f32 %v1812, %v1814
    %v1816 = vadd.f32 %v1812, %v1815
    %vm1817 = vweird.f32 %v1811
    %vm1818 = vweird.f32 %v1812
    %vm1819 = vmor %vm1817, %vm1818
    %v1820 = vsel %vm1819, %v1812, %v1816
    %v1821 = vand.u32 2147483647, %v1811
    %vm1822 = vcmp.eq.f32.partialorder %v1821, 8.507059e+37
    %v1823 = vand.u32 %v1811, 2147483648
    %v1824 = vor.u32 1.1754944e-38, %v1823
    %v1825 = vsel %vm1822, %v1824, %v1820
    %v1826 = vmul.f32 1.0, %v1825
    %v1827 = vtanh.pop %v1807
    %v1828 = vmul.f32 %v1826, %v1774
    %1830 = vrot.lane.b32.xlu0 %v1827, 32
    %v1831 = vpop.permute.xlu0 %1830
    %v1833 = vmul.f32 %v1826, %v1831
    %1835 = vrot.lane.b32.xlu0 %v1833, 32
    %v1836 = vpop.permute.xlu0 %1835
    %v1838 = vadd.f32 %v1828, %v1836
    %v1839 = vtanh.pop %v1838
    %1841 = vrot.lane.b32.xlu0 %v1839, 32
    %v1842 = vpop.permute.xlu0 %1841
    %v1844 = vmul.f32 %v1826, %v1842
    %1846 = vrot.lane.b32.xlu0 %v1844, 64
    %v1847 = vpop.permute.xlu0 %1846
    %1849 = vst.msk [vmem:[%s1241] sm:$0xff] %vm721, %v1847
    %v1850 = vld [vmem:[%s1243] sm:$0xff]
    %v1851 = vpack.c.bf16 %v1844, %v1844
    %1853 = vrot.lane.b32.xlu0 %v1851, 64
    %v1854 = vpop.permute.xlu0 %1853
    %v1856 = vsel %vm721, %v1854, 0
    %1858 = vmatpush.bf16.msra.mxu0 0
    %1859 = vmatpush.bf16.msra.mxu0 0
    %1860 = vmatpush.bf16.msra.mxu0 0
    %1861 = vmatpush.bf16.msra.mxu0 0
    %1862 = vmatpush.bf16.msra.mxu0 0
    %1863 = vmatpush.bf16.msra.mxu0 0
    %1864 = vmatpush.bf16.msra.mxu0 %v1407
    %1865 = vmatpush.bf16.msra.mxu0 %v1406
    %1866 = vmatmul.bf16.gmra.mxu0 %v1856
    %v1867 = vpop.f32.mrf.mxu0
    %v1868 = vadd.f32 0.0, %v1867
    %v1869 = vpop.f32.mrf.mxu0
    %1870 = vdwg.mxu0
    %v1871 = vadd.f32 %v1850, %v1868
    %v1872 = vxor.u32 %v1871, 2147483648
    %v1873 = vmul.f32 %v1872, 1.442695
    %v1874 = vpow.pop %v1873
    %v1875 = vadd.f32 %v1874, 1.0
    %v1876 = vrcp.pop %v1875
    %v1877 = vmul.f32 %v1875, %v1876
    %v1878 = vsub.f32 1.0, %v1877
    %v1879 = vmul.f32 %v1876, %v1878
    %v1880 = vadd.f32 %v1876, %v1879
    %vm1881 = vweird.f32 %v1875
    %vm1882 = vweird.f32 %v1876
    %vm1883 = vmor %vm1881, %vm1882
    %v1884 = vsel %vm1883, %v1876, %v1880
    %v1885 = vand.u32 2147483647, %v1875
    %vm1886 = vcmp.eq.f32.partialorder %v1885, 8.507059e+37
    %v1887 = vand.u32 %v1875, 2147483648
    %v1888 = vor.u32 1.1754944e-38, %v1887
    %v1889 = vsel %vm1886, %v1888, %v1884
    %v1890 = vmul.f32 1.0, %v1889
    %v1891 = vtanh.pop %v1871
    %v1892 = vmul.f32 %v1890, %v1838
    %1894 = vrot.lane.b32.xlu0 %v1891, 32
    %v1895 = vpop.permute.xlu0 %1894
    %v1897 = vmul.f32 %v1890, %v1895
    %1899 = vrot.lane.b32.xlu0 %v1897, 32
    %v1900 = vpop.permute.xlu0 %1899
    %v1902 = vadd.f32 %v1892, %v1900
    %v1903 = vtanh.pop %v1902
    %1905 = vrot.lane.b32.xlu0 %v1903, 32
    %v1906 = vpop.permute.xlu0 %1905
    %v1908 = vmul.f32 %v1890, %v1906
    %1910 = vrot.lane.b32.xlu0 %v1908, 64
    %v1911 = vpop.permute.xlu0 %1910
    %1913 = vst.msk [vmem:[%s1307] sm:$0xff] %vm721, %v1911
    %v1914 = vpack.c.bf16 %v1908, %v1908
    %v1915 = vld [vmem:[#allocation9] sm:$0xf]
    %v1916 = vld [vmem:[#allocation9 + $0x4] sm:$0xf]
    %v1917 = vld [vmem:[#allocation9 + $0x8] sm:$0xf]
    %v1918 = vld [vmem:[#allocation9 + $0xc] sm:$0xf]
    %v1919 = vld [vmem:[%s9] sm:$0x1]
    %v1921 = vperm.slane %v1919, 0
    %1924 = vrot.lane.b32.xlu0 %v1914, 64
    %v1925 = vpop.permute.xlu0 %1924
    %v1930 = vunpack.c.l.b16 %v1915
    %v1931 = vunpack.c.l.b16 %v1916
    %v1932 = vunpack.c.l.b16 %v1917
    %v1933 = vunpack.c.l.b16 %v1918
    %v1934 = vpack.c.b16 %v1931, %v1930
    %v1935 = vpack.c.b16 %v1933, %v1932
    %v1939 = vsel %vm721, %v1925, 0
    %1941 = vmatpush.bf16.msra.mxu0 0
    %1942 = vmatpush.bf16.msra.mxu0 0
    %1943 = vmatpush.bf16.msra.mxu0 0
    %1944 = vmatpush.bf16.msra.mxu0 0
    %1945 = vmatpush.bf16.msra.mxu0 0
    %1946 = vmatpush.bf16.msra.mxu0 0
    %1947 = vmatpush.bf16.msra.mxu0 %v1935
    %1948 = vmatpush.bf16.msra.mxu0 %v1934
    %1949 = vmatmul.bf16.gmra.mxu0 %v1939
    %v1950 = vpop.f32.mrf.mxu0
    %v1951 = vadd.f32 %v1921, %v1950
    %v1952 = vpop.f32.mrf.mxu0
    %1953 = vdwg.mxu0
    %v1954 = vld [vmem:[%s10] sm:$0x1]
    %v1955 = vld [vmem:[%s11] sm:$0x1]
    %v1956 = vsel %vm721, %v1951, 0.0
    %1957 = vadd.xlane.f32.xlu0 %v1956
    %v1958 = vpop.xlane.xlu0 %1957
    %v1959 = vrcp.pop 32.0
    %v1960 = vmul.f32 32.0, %v1959
    %v1961 = vsub.f32 1.0, %v1960
    %v1962 = vmul.f32 %v1959, %v1961
    %v1963 = vadd.f32 %v1959, %v1962
    %vm1964 = vweird.f32 %v1959
    %v1965 = vsel %vm1964, %v1959, %v1963
    %v1966 = vmul.f32 %v1958, %v1965
    %v1967 = vsub.f32 %v1951, %v1966
    %v1968 = vmul.f32 %v1967, %v1967
    %v1969 = vsel %vm721, %v1968, 0.0
    %1970 = vadd.xlane.f32.xlu0 %v1969
    %v1971 = vpop.xlane.xlu0 %1970
    %v1972 = vmul.f32 %v1971, %v1965
    %v1973 = vadd.f32 %v1972, 1e-05
    %v1974 = vrsqrt.pop %v1973
    %v1975 = vmul.f32 %v1974, %v1973
    %v1976 = vmul.f32 %v1975, %v1974
    %v1977 = vmul.f32 0.5, %v1976
    %v1978 = vsub.f32 1.5, %v1977
    %v1979 = vmul.f32 %v1974, %v1978
    %vm1980 = vweird.f32 %v1973
    %vm1981 = vweird.f32 %v1974
    %vm1982 = vmor %vm1980, %vm1981
    %v1983 = vsel %vm1982, %v1974, %v1979
    %v1984 = vmul.f32 %v1967, %v1983
    %v1986 = vperm.slane %v1954, 0
    %v1988 = vmul.f32 %v1984, %v1986
    %v1990 = vperm.slane %v1955, 0
    %v1992 = vadd.f32 %v1988, %v1990
    %v1993 = vmax.f32 %v1992, 0.0
    %v1994 = vpack.c.bf16 %v1993, %v1993
    %v1995 = vld [vmem:[%s12] sm:$0xf]
    %v1996 = vld [vmem:[%s12 + $0x4] sm:$0xf]
    %v1997 = vld [vmem:[%s12 + $0x8] sm:$0xf]
    %v1998 = vld [vmem:[%s12 + $0xc] sm:$0xf]
    %v1999 = vld [vmem:[%s13] sm:$0x1]
    %v2001 = vperm.slane %v1999, 0
    %v2007 = vunpack.c.l.b16 %v1995
    %v2008 = vunpack.c.l.b16 %v1996
    %v2009 = vunpack.c.l.b16 %v1997
    %v2010 = vunpack.c.l.b16 %v1998
    %v2011 = vpack.c.b16 %v2008, %v2007
    %v2012 = vpack.c.b16 %v2010, %v2009
    %v2016 = vsel %vm721, %v1994, 0
    %2018 = vmatpush.bf16.msra.mxu0 0
    %2019 = vmatpush.bf16.msra.mxu0 0
    %2020 = vmatpush.bf16.msra.mxu0 0
    %2021 = vmatpush.bf16.msra.mxu0 0
    %2022 = vmatpush.bf16.msra.mxu0 0
    %2023 = vmatpush.bf16.msra.mxu0 0
    %2024 = vmatpush.bf16.msra.mxu0 %v2012
    %2025 = vmatpush.bf16.msra.mxu0 %v2011
    %2026 = vmatmul.bf16.gmra.mxu0 %v2016
    %v2027 = vpop.f32.mrf.mxu0
    %v2028 = vadd.f32 %v2001, %v2027
    %v2029 = vpop.f32.mrf.mxu0
    %2030 = vdwg.mxu0
    %vm2031 = vcmask 15360
    %2032 = vst.msk [vmem:[%s14] sm:$0xff] %vm2031, %v2028
    // Predicated region
    $region74: #{tpu_custom_call.1} parent=1 // pred_check
      _
    $region75: #{tpu_custom_call.1} parent=1 // pred_check_branch
      %2034 = sbr.rel (0) target = $region77
    $region76: #{tpu_custom_call.1} parent=1 // pred_region
      _
    $region77: #{tpu_custom_call.1} parent=1 // pred_fallthru
      _
    // Predicated region
    $region78: #{tpu_custom_call.1} parent=1 // pred_check
      _
    $region79: #{tpu_custom_call.1} parent=1 // pred_check_branch
      %2036 = sbr.rel (0) target = $region81
    $region80: #{tpu_custom_call.1} parent=1 // pred_region
      _
    $region81: #{tpu_custom_call.1} parent=1 // pred_fallthru
      _
    %2037 = vsyncpa [#allocation5], 1
    %2038 = vsyncpa [#allocation7], 1
    %2039 = vsyncpa [#allocation10], 1

</llo_original>
